<compile_context>
chip_gen: v5e
topology: v5e:2x2
jax: 0.10.0
libtpu: 0.0.40
codegen_flags: <defaults>
</compile_context>

<pallas_src>
import jax
import jax.numpy as jnp
from jax.experimental import pallas as pl
from jax.experimental.pallas import tpu as pltpu

EPS = 1e-5
_VMEM_LIMIT = 48 * 1024 * 1024   # explicit scoped-VMEM cap: above the 16/32 MiB defaults,
                                 # comfortably below every generation's physical VMEM.


# ----------------------------- shared conv tail ----------------------------- #

def _conv3x3_tile(center, up, down, wk_ref, y_ref, st_ref, xpad_ref):
    """3x3 conv (pad=1) on one row tile + single-pass BN statistics.

    center: (TH, W, C)   prepared (pooled / normalized) activation rows of this tile
    up/dn : (1, W, C)    halo rows (already zeroed at the image border)
    wk_ref: (9, C, Cout) 3x3 taps
    y_ref : (1, TH*W, Cout) pre-BN conv output (flattened rows -> wider store slab)
    st_ref: (1, 1, 2, Cout) per-tile [sum, sum_of_squares]
    xpad_ref: VMEM scratch (TH+2, W+2, C) holding the zero-padded tile (no jnp.pad in HBM)
    """
    TH, W, C = center.shape
    Cout = y_ref.shape[-1]

    # Assemble the zero-padded (halo'd) tile in a small VMEM scratch; borders stay zero.
    xpad_ref[...] = jnp.zeros(xpad_ref.shape, xpad_ref.dtype)
    xpad_ref[0:1, 1:W + 1, :] = up
    xpad_ref[1:TH + 1, 1:W + 1, :] = center
    xpad_ref[TH + 1:TH + 2, 1:W + 1, :] = down

    # 3x3 conv as 9 shifted (TH*W, C) x (C, Cout) MXU dots accumulated in f32.  The row tile
    # keeps the accumulator and the shifted-slice relayouts down to a handful of vregs.
    # TODO(synk): for tiny Cin the MXU would prefer one fused (TH*W, 9*Cin) x (9*Cin, Cout)
    # dot; building that im2col tile needs lane-offset scratch writes / in-kernel concat,
    # which are kept out of this version to stay strictly on proven-lowering ops.
    xp = xpad_ref[...]
    acc = jnp.zeros((TH * W, Cout), jnp.float32)
    for dy in range(3):
        for dx in range(3):
            patch = xp[dy:dy + TH, dx:dx + W, :].reshape(TH * W, C)
            acc = acc + jnp.dot(patch, wk_ref[dy * 3 + dx],
                                preferred_element_type=jnp.float32)

    y_ref[0] = acc.astype(y_ref.dtype)
    # Single-pass BN statistics for this tile (reduced over batch/tiles by a tiny XLA sum).
    st_ref[0, 0, 0:1, :] = jnp.sum(acc, axis=0, keepdims=True)
    st_ref[0, 0, 1:2, :] = jnp.sum(acc * acc, axis=0, keepdims=True)


# ------------------------------ Pallas kernels ------------------------------ #

def _pool_conv_kernel(xc_ref, xu_ref, xd_ref, wk_ref, y_ref, st_ref, xpad_ref):
    """Fused MaxPool2d(2) + Conv3x3 (+ BN stats) for one (batch, row-tile) grid step.

    xc_ref: (1, TH, 2, Wp, 2*Cin) raw rows of this tile (2x2 window = axis 2 + lane halves)
    xu_ref/xd_ref: (1, 1, 2, Wp, 2*Cin) raw rows of the pooled halo row above / below.
    """
    Cin = xpad_ref.shape[2]
    i = pl.program_id(1)
    top = (i > 0).astype(jnp.float32)                       # zero halo at the image top
    bot = (i < pl.num_programs(1) - 1).astype(jnp.float32)  # zero halo at the image bottom

    def pool(v):                                            # (R, 2, Wp, 2*Cin) -> (R, Wp, Cin)
        r = jnp.maximum(v[:, 0], v[:, 1])                   # row pair
        return jnp.maximum(r[:, :, :Cin], r[:, :, Cin:])    # column pair (lane halves)

    _conv3x3_tile(pool(xc_ref[0]),
                  pool(xu_ref[0]) * top,
                  pool(xd_ref[0]) * bot,
                  wk_ref, y_ref, st_ref, xpad_ref)


def _bn_conv_kernel(ss_ref, yc_ref, yu_ref, yd_ref, wk_ref, y_ref, st_ref, xpad_ref):
    """Fused BN(prev layer)+ReLU on load + Conv3x3 (+ BN stats) for one grid step.

    ss_ref: (2, Cp) [scale, shift] of the previous layer's training-mode BatchNorm.
    yc_ref: (1, TH, W, Cp) pre-BN activation rows; yu_ref/yd_ref: (1, 1, W, Cp) halo rows.
    """
    Cp = xpad_ref.shape[2]
    i = pl.program_id(1)
    top = (i > 0).astype(jnp.float32)
    bot = (i < pl.num_programs(1) - 1).astype(jnp.float32)

    ss = ss_ref[...]
    scale = ss[0:1, :].reshape(1, 1, Cp)
    shift = ss[1:2, :].reshape(1, 1, Cp)

    def bn_relu(v):                                         # (R, W, Cp)
        return jnp.maximum(v * scale + shift, 0.0)

    _conv3x3_tile(bn_relu(yc_ref[0]),
                  bn_relu(yu_ref[0]) * top,                 # conv pads with 0 beyond the image
                  bn_relu(yd_ref[0]) * bot,
                  wk_ref, y_ref, st_ref, xpad_ref)


def _bn_relu_kernel(y_ref, ss_ref, o_ref):
    # y_ref/o_ref: (TM, pack*C) lane-packed activation slab; ss_ref: (2, pack*C) tiled scale/shift.
    ss = ss_ref[...]
    o_ref[...] = jnp.maximum(y_ref[...] * ss[0:1, :] + ss[1:2, :], 0.0)


# --------------------------------- wrappers --------------------------------- #

def _pick_row_tile(h, row_in_elems, row_out_elems, budget_bytes=8 << 20):
    """Largest divisor of `h` whose double-buffered in+out row tiles fit `budget_bytes`
    (well under v7x's 64 MiB VMEM), capped at 64 rows.  Prefers >= 2 row tiles so the
    row grid axis actually pipelines and feeds both v7x TensorCores."""
    per_row = 4 * 2 * (row_in_elems + row_out_elems)        # f32, double-buffered
    t = max(1, min(h, 64, budget_bytes // max(per_row, 1)))
    if t == h and h >= 8:
        t = h // 2
    while h % t:
        t -= 1
    return max(t, 1)


def _bn_scale_shift(stats, count):
    """Training-mode BatchNorm (gamma=1, beta=0) scale/shift from fused [sum, sumsq] stats.

    Tiny XLA reduction over (N, nT, 2, C).  Note: E[x^2]-E[x]^2 in f32 can drift slightly
    from PyTorch's two-pass variance when |mean| >> std.
    """
    s = jnp.sum(stats, axis=(0, 1))                         # (2, C)
    mean = s[0] / count
    var = s[1] / count - mean * mean                        # biased batch variance
    scale = jax.lax.rsqrt(var + EPS)
    shift = -mean * scale
    return jnp.stack([scale, shift], axis=0)                # (2, C)


def _pool_conv_stats(x, w):
    """MaxPool2d(2) fused into Conv3x3(pad=1), emitting pre-BN output + per-tile BN stats.

    x: (N, H0, W0, Cin) NHWC; w: (3, 3, Cin, Cm).
    Returns y (N, Hp*Wp, Cm) and stats (N, nT, 2, Cm).
    """
    N, H0, W0, Cin = x.shape
    Hp, Wp = H0 // 2, W0 // 2                               # floor, as nn.MaxPool2d(2)
    Cm = w.shape[-1]
    wk = w.reshape(9, Cin, Cm).astype(jnp.float32)

    TH = _pick_row_tile(Hp, 2 * Wp * 2 * Cin, Wp * Cm)
    nT = Hp // TH

    # Free contiguous reshape: (N, 2Hp, 2Wp, Cin) -> (N, Hp, 2, Wp, 2*Cin).  The 2x2 pooling
    # window becomes (axis 2, lane halves of the last axis); trailing dims stay wide.
    xr = x[:, :2 * Hp, :2 * Wp, :].reshape(N, Hp, 2, Wp, 2 * Cin)

    return pl.pallas_call(
        _pool_conv_kernel,
        out_shape=(jax.ShapeDtypeStruct((N, Hp * Wp, Cm), jnp.float32),
                   jax.ShapeDtypeStruct((N, nT, 2, Cm), jnp.float32)),
        grid=(N, nT),
        in_specs=[
            # TH pooled rows (= 2*TH raw rows) of this tile
            pl.BlockSpec((1, TH, 2, Wp, 2 * Cin), lambda n, i: (n, i, 0, 0, 0)),
            # one pooled halo row above / below (clamped; zero-masked in-kernel at borders)
            pl.BlockSpec((1, 1, 2, Wp, 2 * Cin),
                         lambda n, i: (n, jnp.maximum(i * TH - 1, 0), 0, 0, 0)),
            pl.BlockSpec((1, 1, 2, Wp, 2 * Cin),
                         lambda n, i: (n, jnp.minimum(i * TH + TH, Hp - 1), 0, 0, 0)),
            pl.BlockSpec((9, Cin, Cm), lambda n, i: (0, 0, 0)),
        ],
        out_specs=(pl.BlockSpec((1, TH * Wp, Cm), lambda n, i: (n, i, 0)),
                   pl.BlockSpec((1, 1, 2, Cm), lambda n, i: (n, i, 0, 0))),
        scratch_shapes=[pltpu.VMEM((TH + 2, Wp + 2, Cin), jnp.float32)],
        compiler_params=pltpu.CompilerParams(
            dimension_semantics=("parallel", "parallel"),
            vmem_limit_bytes=_VMEM_LIMIT),
    )(xr, xr, xr, wk)


def _bn_conv_stats(ss, y_prev, w):
    """BN(prev stats)+ReLU fused into the load of Conv3x3(pad=1), plus this conv's BN stats.

    ss: (2, Cp) scale/shift of the previous BN; y_prev: (N, H, W, Cp) pre-BN activation;
    w: (3, 3, Cp, Cout).  Returns y (N, H*W, Cout) and stats (N, nT, 2, Cout).
    """
    N, H, W, Cp = y_prev.shape
    Cout = w.shape[-1]
    wk = w.reshape(9, Cp, Cout).astype(jnp.float32)

    TH = _pick_row_tile(H, W * Cp, W * Cout)
    nT = H // TH

    return pl.pallas_call(
        _bn_conv_kernel,
        out_shape=(jax.ShapeDtypeStruct((N, H * W, Cout), jnp.float32),
                   jax.ShapeDtypeStruct((N, nT, 2, Cout), jnp.float32)),
        grid=(N, nT),
        in_specs=[
            pl.BlockSpec((2, Cp), lambda n, i: (0, 0)),
            pl.BlockSpec((1, TH, W, Cp), lambda n, i: (n, i, 0, 0)),
            pl.BlockSpec((1, 1, W, Cp),
                         lambda n, i: (n, jnp.maximum(i * TH - 1, 0), 0, 0)),
            pl.BlockSpec((1, 1, W, Cp),
                         lambda n, i: (n, jnp.minimum(i * TH + TH, H - 1), 0, 0)),
            pl.BlockSpec((9, Cp, Cout), lambda n, i: (0, 0, 0)),
        ],
        out_specs=(pl.BlockSpec((1, TH * W, Cout), lambda n, i: (n, i, 0)),
                   pl.BlockSpec((1, 1, 2, Cout), lambda n, i: (n, i, 0, 0))),
        scratch_shapes=[pltpu.VMEM((TH + 2, W + 2, Cp), jnp.float32)],
        compiler_params=pltpu.CompilerParams(
            dimension_semantics=("parallel", "parallel"),
            vmem_limit_bytes=_VMEM_LIMIT),
    )(ss, y_prev, y_prev, y_prev, wk)


def _bn_relu(y_flat, ss):
    """Standalone normalize+ReLU for the final layer, lane-packed for full-vreg stores."""
    M, C = y_flat.shape
    pack = 1
    if C < 128 and 128 % C == 0 and M % (128 // C) == 0:
        pack = 128 // C                        # present a lane-dense (rows, 128) output slab
    rows = M // pack
    yp = y_flat.reshape(rows, pack * C)        # free contiguous reshape
    ssp = jnp.tile(ss, (1, pack))              # per-channel scale/shift tiled to match packing
    TM = rows if rows <= 2048 else 2048        # big tiles: ~0.35 us per grid step overhead

    out = pl.pallas_call(
        _bn_relu_kernel,
        out_shape=jax.ShapeDtypeStruct((rows, pack * C), jnp.float32),
        grid=(pl.cdiv(rows, TM),),
        in_specs=[pl.BlockSpec((TM, pack * C), lambda i: (i, 0)),
                  pl.BlockSpec((2, pack * C), lambda i: (0, 0))],
        out_specs=pl.BlockSpec((TM, pack * C), lambda i: (i, 0)),
        compiler_params=pltpu.CompilerParams(
            dimension_semantics=("parallel",),
            vmem_limit_bytes=_VMEM_LIMIT),
    )(yp, ssp)
    return out.reshape(M, C)


# --------------------------- parameters & forward ---------------------------- #

def init_down_conv2d_params(key, in_channels, out_channels):
    """Mirrors the module init: xavier_normal_(gain=calculate_gain('relu')), zero bias."""
    mid_channels = out_channels
    gain = float(jnp.sqrt(2.0))

    def xavier_normal(k, cin, cout):
        fan_in, fan_out = cin * 9, cout * 9
        std = gain * jnp.sqrt(2.0 / (fan_in + fan_out))
        return jax.random.normal(k, (3, 3, cin, cout), jnp.float32) * std

    k1, k2 = jax.random.split(key)
    return {
        "w1": xavier_normal(k1, in_channels, mid_channels),
        # Conv biases kept for parameter parity but NOT applied: a per-channel bias before
        # training-mode BatchNorm is exactly cancelled by the mean subtraction (zero-init anyway).
        "b1": jnp.zeros((mid_channels,), jnp.float32),
        "w2": xavier_normal(k2, mid_channels, out_channels),
        "b2": jnp.zeros((out_channels,), jnp.float32),
    }


def down_conv2d_forward(params, x_nchw):
    """_down_conv2d(in_ch, out_ch, k).forward(x) with NCHW x (training-mode BN statistics)."""
    x = jnp.transpose(x_nchw, (0, 2, 3, 1)).astype(jnp.float32)   # NCHW -> NHWC (boundary only)
    N, H0, W0, _ = x.shape
    Hp, Wp = H0 // 2, W0 // 2

    # MaxPool2d(2) fused into conv1 + BN1 batch statistics: one pass over x.
    y1_flat, st1 = _pool_conv_stats(x, params["w1"])              # (N, Hp*Wp, Cm), (N, nT, 2, Cm)
    ss1 = _bn_scale_shift(st1, N * Hp * Wp)                       # tiny XLA reduction -> (2, Cm)

    # BN1 + ReLU fused into conv2's load, plus BN2 batch statistics.
    y1 = y1_flat.reshape(N, Hp, Wp, -1)                           # free reshape
    y2_flat, st2 = _bn_conv_stats(ss1, y1, params["w2"])          # (N, Hp*Wp, Cout), (N, nT, 2, Cout)
    ss2 = _bn_scale_shift(st2, N * Hp * Wp)

    # Final BN2 + ReLU (lane-packed flat pass).
    Cout = params["w2"].shape[-1]
    out = _bn_relu(y2_flat.reshape(N * Hp * Wp, Cout), ss2)
    out = out.reshape(N, Hp, Wp, Cout)
    return jnp.transpose(out, (0, 3, 1, 2))                       # back to NCHW
    # TODO(synk): BatchNorm running_mean/running_var buffers are not updated (fresh-module,
    # training-mode forward only).


if __name__ == "__main__":
    in_channels, out_channels = 4, 8
    key = jax.random.PRNGKey(0)
    k_param, k_x = jax.random.split(key)

    params = init_down_conv2d_params(k_param, in_channels, out_channels)
    x = jax.random.normal(k_x, (2, in_channels, 16, 16), jnp.float32)  # NCHW input

    fwd = jax.jit(down_conv2d_forward)
    out = fwd(params, x)
    out = jax.block_until_ready(out)
    assert out.shape == (2, out_channels, 8, 8), out.shape
    print("KERNEL_OK")
</pallas_src>

<mosaic_0001>
module attributes {stable_mosaic.version = 11 : i64} {
  func.func @_pool_conv_kernel(%arg0: i32, %arg1: i32, %arg2: memref<1x4x2x8x8xf32, #tpu.memory_space<vmem>>, %arg3: memref<1x1x2x8x8xf32, #tpu.memory_space<vmem>>, %arg4: memref<1x1x2x8x8xf32, #tpu.memory_space<vmem>>, %arg5: memref<9x4x8xf32, #tpu.memory_space<vmem>>, %arg6: memref<1x32x8xf32, #tpu.memory_space<vmem>>, %arg7: memref<1x1x2x8xf32, #tpu.memory_space<vmem>>, %arg8: memref<6x10x4xf32, #tpu.memory_space<vmem>>) attributes {dimension_semantics = [#tpu.dimension_semantics<parallel>, #tpu.dimension_semantics<parallel>], iteration_bounds = array<i64: 2, 2>, scalar_prefetch = 0 : i64, scratch_operands = 1 : i64, tpu.core_type = #tpu.core_type<tc>, window_params = [{transform_indices = @transform_0, window_bounds = array<i64: 1, 4, 2, 8, 8>}, {transform_indices = @transform_1, window_bounds = array<i64: 1, 1, 2, 8, 8>}, {transform_indices = @transform_2, window_bounds = array<i64: 1, 1, 2, 8, 8>}, {pipeline_mode = #tpu.pipeline_mode<synchronous>, transform_indices = @transform_3, window_bounds = array<i64: 9, 4, 8>}, {transform_indices = @transform_4, window_bounds = array<i64: 1, 32, 8>}, {transform_indices = @transform_5, window_bounds = array<i64: 1, 1, 2, 8>}]} {
    %c0_i32 = arith.constant 0 : i32
    %0 = arith.cmpi sgt, %arg1, %c0_i32 : i32
    %1 = arith.extui %0 : i1 to i32
    %2 = arith.sitofp %1 : i32 to f32
    %c1_i32 = arith.constant 1 : i32
    %3 = arith.cmpi slt, %arg1, %c1_i32 : i32
    %4 = arith.extui %3 : i1 to i32
    %5 = arith.sitofp %4 : i32 to f32
    %c0 = arith.constant 0 : index
    %c0_0 = arith.constant 0 : index
    %c0_1 = arith.constant 0 : index
    %c0_2 = arith.constant 0 : index
    %c0_3 = arith.constant 0 : index
    %6 = vector.load %arg2[%c0, %c0_0, %c0_1, %c0_2, %c0_3] : memref<1x4x2x8x8xf32, #tpu.memory_space<vmem>>, vector<1x4x2x8x8xf32>
    %7 = vector.shape_cast %6 : vector<1x4x2x8x8xf32> to vector<4x2x8x8xf32>
    %8 = vector.extract_strided_slice %7 {offsets = [0, 0, 0, 0], sizes = [4, 1, 8, 8], strides = [1, 1, 1, 1]} : vector<4x2x8x8xf32> to vector<4x1x8x8xf32>
    %9 = vector.shape_cast %8 : vector<4x1x8x8xf32> to vector<4x8x8xf32>
    %10 = vector.extract_strided_slice %7 {offsets = [0, 1, 0, 0], sizes = [4, 1, 8, 8], strides = [1, 1, 1, 1]} : vector<4x2x8x8xf32> to vector<4x1x8x8xf32>
    %11 = vector.shape_cast %10 : vector<4x1x8x8xf32> to vector<4x8x8xf32>
    %12 = arith.maximumf %9, %11 : vector<4x8x8xf32>
    %13 = vector.extract_strided_slice %12 {offsets = [0, 0, 0], sizes = [4, 8, 4], strides = [1, 1, 1]} : vector<4x8x8xf32> to vector<4x8x4xf32>
    %14 = vector.extract_strided_slice %12 {offsets = [0, 0, 4], sizes = [4, 8, 4], strides = [1, 1, 1]} : vector<4x8x8xf32> to vector<4x8x4xf32>
    %15 = arith.maximumf %13, %14 : vector<4x8x4xf32>
    %c0_4 = arith.constant 0 : index
    %c0_5 = arith.constant 0 : index
    %c0_6 = arith.constant 0 : index
    %c0_7 = arith.constant 0 : index
    %c0_8 = arith.constant 0 : index
    %16 = vector.load %arg3[%c0_4, %c0_5, %c0_6, %c0_7, %c0_8] : memref<1x1x2x8x8xf32, #tpu.memory_space<vmem>>, vector<1x1x2x8x8xf32>
    %17 = vector.shape_cast %16 : vector<1x1x2x8x8xf32> to vector<1x2x8x8xf32>
    %18 = vector.extract_strided_slice %17 {offsets = [0, 0, 0, 0], sizes = [1, 1, 8, 8], strides = [1, 1, 1, 1]} : vector<1x2x8x8xf32> to vector<1x1x8x8xf32>
    %19 = vector.shape_cast %18 : vector<1x1x8x8xf32> to vector<1x8x8xf32>
    %20 = vector.extract_strided_slice %17 {offsets = [0, 1, 0, 0], sizes = [1, 1, 8, 8], strides = [1, 1, 1, 1]} : vector<1x2x8x8xf32> to vector<1x1x8x8xf32>
    %21 = vector.shape_cast %20 : vector<1x1x8x8xf32> to vector<1x8x8xf32>
    %22 = arith.maximumf %19, %21 : vector<1x8x8xf32>
    %23 = vector.extract_strided_slice %22 {offsets = [0, 0, 0], sizes = [1, 8, 4], strides = [1, 1, 1]} : vector<1x8x8xf32> to vector<1x8x4xf32>
    %24 = vector.extract_strided_slice %22 {offsets = [0, 0, 4], sizes = [1, 8, 4], strides = [1, 1, 1]} : vector<1x8x8xf32> to vector<1x8x4xf32>
    %25 = arith.maximumf %23, %24 : vector<1x8x4xf32>
    %26 = vector.broadcast %2 : f32 to vector<1x8x4xf32>
    %27 = arith.mulf %25, %26 : vector<1x8x4xf32>
    %c0_9 = arith.constant 0 : index
    %c0_10 = arith.constant 0 : index
    %c0_11 = arith.constant 0 : index
    %c0_12 = arith.constant 0 : index
    %c0_13 = arith.constant 0 : index
    %28 = vector.load %arg4[%c0_9, %c0_10, %c0_11, %c0_12, %c0_13] : memref<1x1x2x8x8xf32, #tpu.memory_space<vmem>>, vector<1x1x2x8x8xf32>
    %29 = vector.shape_cast %28 : vector<1x1x2x8x8xf32> to vector<1x2x8x8xf32>
    %30 = vector.extract_strided_slice %29 {offsets = [0, 0, 0, 0], sizes = [1, 1, 8, 8], strides = [1, 1, 1, 1]} : vector<1x2x8x8xf32> to vector<1x1x8x8xf32>
    %31 = vector.shape_cast %30 : vector<1x1x8x8xf32> to vector<1x8x8xf32>
    %32 = vector.extract_strided_slice %29 {offsets = [0, 1, 0, 0], sizes = [1, 1, 8, 8], strides = [1, 1, 1, 1]} : vector<1x2x8x8xf32> to vector<1x1x8x8xf32>
    %33 = vector.shape_cast %32 : vector<1x1x8x8xf32> to vector<1x8x8xf32>
    %34 = arith.maximumf %31, %33 : vector<1x8x8xf32>
    %35 = vector.extract_strided_slice %34 {offsets = [0, 0, 0], sizes = [1, 8, 4], strides = [1, 1, 1]} : vector<1x8x8xf32> to vector<1x8x4xf32>
    %36 = vector.extract_strided_slice %34 {offsets = [0, 0, 4], sizes = [1, 8, 4], strides = [1, 1, 1]} : vector<1x8x8xf32> to vector<1x8x4xf32>
    %37 = arith.maximumf %35, %36 : vector<1x8x4xf32>
    %38 = vector.broadcast %5 : f32 to vector<1x8x4xf32>
    %39 = arith.mulf %37, %38 : vector<1x8x4xf32>
    %cst = arith.constant 0.000000e+00 : f32
    %40 = vector.broadcast %cst : f32 to vector<6x10x4xf32>
    %c0_14 = arith.constant 0 : index
    %c0_15 = arith.constant 0 : index
    %c0_16 = arith.constant 0 : index
    %41 = vector.load %arg8[%c0_14, %c0_15, %c0_16] : memref<6x10x4xf32, #tpu.memory_space<vmem>>, vector<6x10x4xf32>
    tpu.vector_store %arg8[%c0_14, %c0_15, %c0_16], %40 {strides = array<i32>} : memref<6x10x4xf32, #tpu.memory_space<vmem>>, vector<6x10x4xf32>,
    %c0_17 = arith.constant 0 : index
    %c1 = arith.constant 1 : index
    %c0_18 = arith.constant 0 : index
    %42 = vector.load %arg8[%c0_17, %c1, %c0_18] : memref<6x10x4xf32, #tpu.memory_space<vmem>>, vector<1x8x4xf32>
    tpu.vector_store %arg8[%c0_17, %c1, %c0_18], %27 {strides = array<i32>} : memref<6x10x4xf32, #tpu.memory_space<vmem>>, vector<1x8x4xf32>,
    %c1_19 = arith.constant 1 : index
    %c1_20 = arith.constant 1 : index
    %c0_21 = arith.constant 0 : index
    %43 = vector.load %arg8[%c1_19, %c1_20, %c0_21] : memref<6x10x4xf32, #tpu.memory_space<vmem>>, vector<4x8x4xf32>
    tpu.vector_store %arg8[%c1_19, %c1_20, %c0_21], %15 {strides = array<i32>} : memref<6x10x4xf32, #tpu.memory_space<vmem>>, vector<4x8x4xf32>,
    %c5 = arith.constant 5 : index
    %c1_22 = arith.constant 1 : index
    %c0_23 = arith.constant 0 : index
    %44 = vector.load %arg8[%c5, %c1_22, %c0_23] : memref<6x10x4xf32, #tpu.memory_space<vmem>>, vector<1x8x4xf32>
    tpu.vector_store %arg8[%c5, %c1_22, %c0_23], %39 {strides = array<i32>} : memref<6x10x4xf32, #tpu.memory_space<vmem>>, vector<1x8x4xf32>,
    %c0_24 = arith.constant 0 : index
    %c0_25 = arith.constant 0 : index
    %c0_26 = arith.constant 0 : index
    %45 = vector.load %arg8[%c0_24, %c0_25, %c0_26] : memref<6x10x4xf32, #tpu.memory_space<vmem>>, vector<6x10x4xf32>
    %cst_27 = arith.constant 0.000000e+00 : f32
    %46 = vector.broadcast %cst_27 : f32 to vector<32x8xf32>
    %47 = vector.extract_strided_slice %45 {offsets = [0, 0, 0], sizes = [4, 8, 4], strides = [1, 1, 1]} : vector<6x10x4xf32> to vector<4x8x4xf32>
    %48 = vector.shape_cast %47 : vector<4x8x4xf32> to vector<32x4xf32>
    %c0_28 = arith.constant 0 : index
    %c0_29 = arith.constant 0 : index
    %c0_30 = arith.constant 0 : index
    %49 = vector.load %arg5[%c0_28, %c0_29, %c0_30] : memref<9x4x8xf32, #tpu.memory_space<vmem>>, vector<1x4x8xf32>
    %50 = vector.shape_cast %49 : vector<1x4x8xf32> to vector<4x8xf32>
    %cst_31 = arith.constant dense<0.000000e+00> : vector<32x8xf32>
    %51 = tpu.matmul %48, %50, %cst_31 {dimension_numbers = #tpu.dot_dimension_numbers<[1], [0], [0], [1], [0, 0, 1, 1], [], []>} : vector<32x4xf32>, vector<4x8xf32>, vector<32x8xf32> -> vector<32x8xf32>
    %52 = arith.addf %46, %51 : vector<32x8xf32>
    %53 = vector.extract_strided_slice %45 {offsets = [0, 1, 0], sizes = [4, 8, 4], strides = [1, 1, 1]} : vector<6x10x4xf32> to vector<4x8x4xf32>
    %54 = vector.shape_cast %53 : vector<4x8x4xf32> to vector<32x4xf32>
    %c1_32 = arith.constant 1 : index
    %c0_33 = arith.constant 0 : index
    %c0_34 = arith.constant 0 : index
    %55 = vector.load %arg5[%c1_32, %c0_33, %c0_34] : memref<9x4x8xf32, #tpu.memory_space<vmem>>, vector<1x4x8xf32>
    %56 = vector.shape_cast %55 : vector<1x4x8xf32> to vector<4x8xf32>
    %cst_35 = arith.constant dense<0.000000e+00> : vector<32x8xf32>
    %57 = tpu.matmul %54, %56, %cst_35 {dimension_numbers = #tpu.dot_dimension_numbers<[1], [0], [0], [1], [0, 0, 1, 1], [], []>} : vector<32x4xf32>, vector<4x8xf32>, vector<32x8xf32> -> vector<32x8xf32>
    %58 = arith.addf %52, %57 : vector<32x8xf32>
    %59 = vector.extract_strided_slice %45 {offsets = [0, 2, 0], sizes = [4, 8, 4], strides = [1, 1, 1]} : vector<6x10x4xf32> to vector<4x8x4xf32>
    %60 = vector.shape_cast %59 : vector<4x8x4xf32> to vector<32x4xf32>
    %c2 = arith.constant 2 : index
    %c0_36 = arith.constant 0 : index
    %c0_37 = arith.constant 0 : index
    %61 = vector.load %arg5[%c2, %c0_36, %c0_37] : memref<9x4x8xf32, #tpu.memory_space<vmem>>, vector<1x4x8xf32>
    %62 = vector.shape_cast %61 : vector<1x4x8xf32> to vector<4x8xf32>
    %cst_38 = arith.constant dense<0.000000e+00> : vector<32x8xf32>
    %63 = tpu.matmul %60, %62, %cst_38 {dimension_numbers = #tpu.dot_dimension_numbers<[1], [0], [0], [1], [0, 0, 1, 1], [], []>} : vector<32x4xf32>, vector<4x8xf32>, vector<32x8xf32> -> vector<32x8xf32>
    %64 = arith.addf %58, %63 : vector<32x8xf32>
    %65 = vector.extract_strided_slice %45 {offsets = [1, 0, 0], sizes = [4, 8, 4], strides = [1, 1, 1]} : vector<6x10x4xf32> to vector<4x8x4xf32>
    %66 = vector.shape_cast %65 : vector<4x8x4xf32> to vector<32x4xf32>
    %c3 = arith.constant 3 : index
    %c0_39 = arith.constant 0 : index
    %c0_40 = arith.constant 0 : index
    %67 = vector.load %arg5[%c3, %c0_39, %c0_40] : memref<9x4x8xf32, #tpu.memory_space<vmem>>, vector<1x4x8xf32>
    %68 = vector.shape_cast %67 : vector<1x4x8xf32> to vector<4x8xf32>
    %cst_41 = arith.constant dense<0.000000e+00> : vector<32x8xf32>
    %69 = tpu.matmul %66, %68, %cst_41 {dimension_numbers = #tpu.dot_dimension_numbers<[1], [0], [0], [1], [0, 0, 1, 1], [], []>} : vector<32x4xf32>, vector<4x8xf32>, vector<32x8xf32> -> vector<32x8xf32>
    %70 = arith.addf %64, %69 : vector<32x8xf32>
    %71 = vector.extract_strided_slice %45 {offsets = [1, 1, 0], sizes = [4, 8, 4], strides = [1, 1, 1]} : vector<6x10x4xf32> to vector<4x8x4xf32>
    %72 = vector.shape_cast %71 : vector<4x8x4xf32> to vector<32x4xf32>
    %c4 = arith.constant 4 : index
    %c0_42 = arith.constant 0 : index
    %c0_43 = arith.constant 0 : index
    %73 = vector.load %arg5[%c4, %c0_42, %c0_43] : memref<9x4x8xf32, #tpu.memory_space<vmem>>, vector<1x4x8xf32>
    %74 = vector.shape_cast %73 : vector<1x4x8xf32> to vector<4x8xf32>
    %cst_44 = arith.constant dense<0.000000e+00> : vector<32x8xf32>
    %75 = tpu.matmul %72, %74, %cst_44 {dimension_numbers = #tpu.dot_dimension_numbers<[1], [0], [0], [1], [0, 0, 1, 1], [], []>} : vector<32x4xf32>, vector<4x8xf32>, vector<32x8xf32> -> vector<32x8xf32>
    %76 = arith.addf %70, %75 : vector<32x8xf32>
    %77 = vector.extract_strided_slice %45 {offsets = [1, 2, 0], sizes = [4, 8, 4], strides = [1, 1, 1]} : vector<6x10x4xf32> to vector<4x8x4xf32>
    %78 = vector.shape_cast %77 : vector<4x8x4xf32> to vector<32x4xf32>
    %c5_45 = arith.constant 5 : index
    %c0_46 = arith.constant 0 : index
    %c0_47 = arith.constant 0 : index
    %79 = vector.load %arg5[%c5_45, %c0_46, %c0_47] : memref<9x4x8xf32, #tpu.memory_space<vmem>>, vector<1x4x8xf32>
    %80 = vector.shape_cast %79 : vector<1x4x8xf32> to vector<4x8xf32>
    %cst_48 = arith.constant dense<0.000000e+00> : vector<32x8xf32>
    %81 = tpu.matmul %78, %80, %cst_48 {dimension_numbers = #tpu.dot_dimension_numbers<[1], [0], [0], [1], [0, 0, 1, 1], [], []>} : vector<32x4xf32>, vector<4x8xf32>, vector<32x8xf32> -> vector<32x8xf32>
    %82 = arith.addf %76, %81 : vector<32x8xf32>
    %83 = vector.extract_strided_slice %45 {offsets = [2, 0, 0], sizes = [4, 8, 4], strides = [1, 1, 1]} : vector<6x10x4xf32> to vector<4x8x4xf32>
    %84 = vector.shape_cast %83 : vector<4x8x4xf32> to vector<32x4xf32>
    %c6 = arith.constant 6 : index
    %c0_49 = arith.constant 0 : index
    %c0_50 = arith.constant 0 : index
    %85 = vector.load %arg5[%c6, %c0_49, %c0_50] : memref<9x4x8xf32, #tpu.memory_space<vmem>>, vector<1x4x8xf32>
    %86 = vector.shape_cast %85 : vector<1x4x8xf32> to vector<4x8xf32>
    %cst_51 = arith.constant dense<0.000000e+00> : vector<32x8xf32>
    %87 = tpu.matmul %84, %86, %cst_51 {dimension_numbers = #tpu.dot_dimension_numbers<[1], [0], [0], [1], [0, 0, 1, 1], [], []>} : vector<32x4xf32>, vector<4x8xf32>, vector<32x8xf32> -> vector<32x8xf32>
    %88 = arith.addf %82, %87 : vector<32x8xf32>
    %89 = vector.extract_strided_slice %45 {offsets = [2, 1, 0], sizes = [4, 8, 4], strides = [1, 1, 1]} : vector<6x10x4xf32> to vector<4x8x4xf32>
    %90 = vector.shape_cast %89 : vector<4x8x4xf32> to vector<32x4xf32>
    %c7 = arith.constant 7 : index
    %c0_52 = arith.constant 0 : index
    %c0_53 = arith.constant 0 : index
    %91 = vector.load %arg5[%c7, %c0_52, %c0_53] : memref<9x4x8xf32, #tpu.memory_space<vmem>>, vector<1x4x8xf32>
    %92 = vector.shape_cast %91 : vector<1x4x8xf32> to vector<4x8xf32>
    %cst_54 = arith.constant dense<0.000000e+00> : vector<32x8xf32>
    %93 = tpu.matmul %90, %92, %cst_54 {dimension_numbers = #tpu.dot_dimension_numbers<[1], [0], [0], [1], [0, 0, 1, 1], [], []>} : vector<32x4xf32>, vector<4x8xf32>, vector<32x8xf32> -> vector<32x8xf32>
    %94 = arith.addf %88, %93 : vector<32x8xf32>
    %95 = vector.extract_strided_slice %45 {offsets = [2, 2, 0], sizes = [4, 8, 4], strides = [1, 1, 1]} : vector<6x10x4xf32> to vector<4x8x4xf32>
    %96 = vector.shape_cast %95 : vector<4x8x4xf32> to vector<32x4xf32>
    %c8 = arith.constant 8 : index
    %c0_55 = arith.constant 0 : index
    %c0_56 = arith.constant 0 : index
    %97 = vector.load %arg5[%c8, %c0_55, %c0_56] : memref<9x4x8xf32, #tpu.memory_space<vmem>>, vector<1x4x8xf32>
    %98 = vector.shape_cast %97 : vector<1x4x8xf32> to vector<4x8xf32>
    %cst_57 = arith.constant dense<0.000000e+00> : vector<32x8xf32>
    %99 = tpu.matmul %96, %98, %cst_57 {dimension_numbers = #tpu.dot_dimension_numbers<[1], [0], [0], [1], [0, 0, 1, 1], [], []>} : vector<32x4xf32>, vector<4x8xf32>, vector<32x8xf32> -> vector<32x8xf32>
    %100 = arith.addf %94, %99 : vector<32x8xf32>
    %c0_58 = arith.constant 0 : index
    %c0_59 = arith.constant 0 : index
    %c0_60 = arith.constant 0 : index
    %101 = vector.load %arg6[%c0_58, %c0_59, %c0_60] : memref<1x32x8xf32, #tpu.memory_space<vmem>>, vector<1x32x8xf32>
    %102 = vector.shape_cast %101 : vector<1x32x8xf32> to vector<32x8xf32>
    %103 = vector.shape_cast %100 : vector<32x8xf32> to vector<1x32x8xf32>
    tpu.vector_store %arg6[%c0_58, %c0_59, %c0_60], %103 {strides = array<i32>} : memref<1x32x8xf32, #tpu.memory_space<vmem>>, vector<1x32x8xf32>,
    %cst_61 = arith.constant dense<0.000000e+00> : vector<8xf32>
    %104 = vector.multi_reduction <add>, %100, %cst_61 [0] : vector<32x8xf32> to vector<8xf32>
    %105 = vector.shape_cast %104 : vector<8xf32> to vector<1x8xf32>
    %c0_62 = arith.constant 0 : index
    %c0_63 = arith.constant 0 : index
    %c0_64 = arith.constant 0 : index
    %c0_65 = arith.constant 0 : index
    %106 = vector.load %arg7[%c0_62, %c0_63, %c0_64, %c0_65] : memref<1x1x2x8xf32, #tpu.memory_space<vmem>>, vector<1x1x1x8xf32>
    %107 = vector.shape_cast %106 : vector<1x1x1x8xf32> to vector<1x8xf32>
    %108 = vector.shape_cast %105 : vector<1x8xf32> to vector<1x1x1x8xf32>
    tpu.vector_store %arg7[%c0_62, %c0_63, %c0_64, %c0_65], %108 {strides = array<i32>} : memref<1x1x2x8xf32, #tpu.memory_space<vmem>>, vector<1x1x1x8xf32>,
    %109 = arith.mulf %100, %100 : vector<32x8xf32>
    %cst_66 = arith.constant dense<0.000000e+00> : vector<8xf32>
    %110 = vector.multi_reduction <add>, %109, %cst_66 [0] : vector<32x8xf32> to vector<8xf32>
    %111 = vector.shape_cast %110 : vector<8xf32> to vector<1x8xf32>
    %c0_67 = arith.constant 0 : index
    %c0_68 = arith.constant 0 : index
    %c1_69 = arith.constant 1 : index
    %c0_70 = arith.constant 0 : index
    %112 = vector.load %arg7[%c0_67, %c0_68, %c1_69, %c0_70] : memref<1x1x2x8xf32, #tpu.memory_space<vmem>>, vector<1x1x1x8xf32>
    %113 = vector.shape_cast %112 : vector<1x1x1x8xf32> to vector<1x8xf32>
    %114 = vector.shape_cast %111 : vector<1x8xf32> to vector<1x1x1x8xf32>
    tpu.vector_store %arg7[%c0_67, %c0_68, %c1_69, %c0_70], %114 {strides = array<i32>} : memref<1x1x2x8xf32, #tpu.memory_space<vmem>>, vector<1x1x1x8xf32>,
    return
  }
  func.func @transform_0(%arg0: i32, %arg1: i32) -> (i32, i32, i32, i32, i32) {
    %c0_i32 = arith.constant 0 : i32
    %c0_i32_0 = arith.constant 0 : i32
    %c0_i32_1 = arith.constant 0 : i32
    %c0_i32_2 = arith.constant 0 : i32
    return %arg0, %arg1, %c0_i32, %c0_i32_0, %c0_i32_1 : i32, i32, i32, i32, i32
  }
  func.func @transform_1(%arg0: i32, %arg1: i32) -> (i32, i32, i32, i32, i32) {
    %c4_i32 = arith.constant 4 : i32
    %0 = arith.muli %arg1, %c4_i32 : i32
    %c1_i32 = arith.constant 1 : i32
    %1 = arith.subi %0, %c1_i32 : i32
    %c0_i32 = arith.constant 0 : i32
    %2 = arith.maxsi %1, %c0_i32 : i32
    %c0_i32_0 = arith.constant 0 : i32
    %c0_i32_1 = arith.constant 0 : i32
    %c0_i32_2 = arith.constant 0 : i32
    %c0_i32_3 = arith.constant 0 : i32
    return %arg0, %2, %c0_i32_0, %c0_i32_1, %c0_i32_2 : i32, i32, i32, i32, i32
  }
  func.func @transform_2(%arg0: i32, %arg1: i32) -> (i32, i32, i32, i32, i32) {
    %c4_i32 = arith.constant 4 : i32
    %0 = arith.muli %arg1, %c4_i32 : i32
    %c4_i32_0 = arith.constant 4 : i32
    %1 = arith.addi %0, %c4_i32_0 : i32
    %c7_i32 = arith.constant 7 : i32
    %2 = arith.minsi %1, %c7_i32 : i32
    %c0_i32 = arith.constant 0 : i32
    %c0_i32_1 = arith.constant 0 : i32
    %c0_i32_2 = arith.constant 0 : i32
    %c0_i32_3 = arith.constant 0 : i32
    return %arg0, %2, %c0_i32, %c0_i32_1, %c0_i32_2 : i32, i32, i32, i32, i32
  }
  func.func @transform_3(%arg0: i32, %arg1: i32) -> (i32, i32, i32) {
    %c0_i32 = arith.constant 0 : i32
    %c0_i32_0 = arith.constant 0 : i32
    %c0_i32_1 = arith.constant 0 : i32
    %c0_i32_2 = arith.constant 0 : i32
    return %c0_i32, %c0_i32_0, %c0_i32_1 : i32, i32, i32
  }
  func.func @transform_4(%arg0: i32, %arg1: i32) -> (i32, i32, i32) {
    %c0_i32 = arith.constant 0 : i32
    %c0_i32_0 = arith.constant 0 : i32
    return %arg0, %arg1, %c0_i32 : i32, i32, i32
  }
  func.func @transform_5(%arg0: i32, %arg1: i32) -> (i32, i32, i32, i32) {
    %c0_i32 = arith.constant 0 : i32
    %c0_i32_0 = arith.constant 0 : i32
    %c0_i32_1 = arith.constant 0 : i32
    return %arg0, %arg1, %c0_i32, %c0_i32_0 : i32, i32, i32, i32
  }
}

module attributes {stable_mosaic.version = 11 : i64} {
  func.func @_bn_conv_kernel(%arg0: i32, %arg1: i32, %arg2: memref<2x8xf32, #tpu.memory_space<vmem>>, %arg3: memref<1x4x8x8xf32, #tpu.memory_space<vmem>>, %arg4: memref<1x1x8x8xf32, #tpu.memory_space<vmem>>, %arg5: memref<1x1x8x8xf32, #tpu.memory_space<vmem>>, %arg6: memref<9x8x8xf32, #tpu.memory_space<vmem>>, %arg7: memref<1x32x8xf32, #tpu.memory_space<vmem>>, %arg8: memref<1x1x2x8xf32, #tpu.memory_space<vmem>>, %arg9: memref<6x10x8xf32, #tpu.memory_space<vmem>>) attributes {dimension_semantics = [#tpu.dimension_semantics<parallel>, #tpu.dimension_semantics<parallel>], iteration_bounds = array<i64: 2, 2>, scalar_prefetch = 0 : i64, scratch_operands = 1 : i64, tpu.core_type = #tpu.core_type<tc>, window_params = [{pipeline_mode = #tpu.pipeline_mode<synchronous>, transform_indices = @transform_0, window_bounds = array<i64: 2, 8>}, {transform_indices = @transform_1, window_bounds = array<i64: 1, 4, 8, 8>}, {transform_indices = @transform_2, window_bounds = array<i64: 1, 1, 8, 8>}, {transform_indices = @transform_3, window_bounds = array<i64: 1, 1, 8, 8>}, {pipeline_mode = #tpu.pipeline_mode<synchronous>, transform_indices = @transform_4, window_bounds = array<i64: 9, 8, 8>}, {transform_indices = @transform_5, window_bounds = array<i64: 1, 32, 8>}, {transform_indices = @transform_6, window_bounds = array<i64: 1, 1, 2, 8>}]} {
    %c0_i32 = arith.constant 0 : i32
    %0 = arith.cmpi sgt, %arg1, %c0_i32 : i32
    %1 = arith.extui %0 : i1 to i32
    %2 = arith.sitofp %1 : i32 to f32
    %c1_i32 = arith.constant 1 : i32
    %3 = arith.cmpi slt, %arg1, %c1_i32 : i32
    %4 = arith.extui %3 : i1 to i32
    %5 = arith.sitofp %4 : i32 to f32
    %c0 = arith.constant 0 : index
    %c0_0 = arith.constant 0 : index
    %6 = vector.load %arg2[%c0, %c0_0] : memref<2x8xf32, #tpu.memory_space<vmem>>, vector<2x8xf32>
    %7 = vector.extract_strided_slice %6 {offsets = [0, 0], sizes = [1, 8], strides = [1, 1]} : vector<2x8xf32> to vector<1x8xf32>
    %8 = vector.shape_cast %7 : vector<1x8xf32> to vector<1x1x8xf32>
    %9 = vector.extract_strided_slice %6 {offsets = [1, 0], sizes = [1, 8], strides = [1, 1]} : vector<2x8xf32> to vector<1x8xf32>
    %10 = vector.shape_cast %9 : vector<1x8xf32> to vector<1x1x8xf32>
    %c0_1 = arith.constant 0 : index
    %c0_2 = arith.constant 0 : index
    %c0_3 = arith.constant 0 : index
    %c0_4 = arith.constant 0 : index
    %11 = vector.load %arg3[%c0_1, %c0_2, %c0_3, %c0_4] : memref<1x4x8x8xf32, #tpu.memory_space<vmem>>, vector<1x4x8x8xf32>
    %12 = vector.shape_cast %11 : vector<1x4x8x8xf32> to vector<4x8x8xf32>
    %13 = vector.broadcast %8 : vector<1x1x8xf32> to vector<4x8x8xf32>
    %14 = arith.mulf %12, %13 : vector<4x8x8xf32>
    %15 = vector.broadcast %10 : vector<1x1x8xf32> to vector<4x8x8xf32>
    %16 = arith.addf %14, %15 : vector<4x8x8xf32>
    %cst = arith.constant 0.000000e+00 : f32
    %17 = vector.broadcast %cst : f32 to vector<4x8x8xf32>
    %18 = arith.maximumf %16, %17 : vector<4x8x8xf32>
    %c0_5 = arith.constant 0 : index
    %c0_6 = arith.constant 0 : index
    %c0_7 = arith.constant 0 : index
    %c0_8 = arith.constant 0 : index
    %19 = vector.load %arg4[%c0_5, %c0_6, %c0_7, %c0_8] : memref<1x1x8x8xf32, #tpu.memory_space<vmem>>, vector<1x1x8x8xf32>
    %20 = vector.shape_cast %19 : vector<1x1x8x8xf32> to vector<1x8x8xf32>
    %21 = vector.broadcast %8 : vector<1x1x8xf32> to vector<1x8x8xf32>
    %22 = arith.mulf %20, %21 : vector<1x8x8xf32>
    %23 = vector.broadcast %10 : vector<1x1x8xf32> to vector<1x8x8xf32>
    %24 = arith.addf %22, %23 : vector<1x8x8xf32>
    %cst_9 = arith.constant 0.000000e+00 : f32
    %25 = vector.broadcast %cst_9 : f32 to vector<1x8x8xf32>
    %26 = arith.maximumf %24, %25 : vector<1x8x8xf32>
    %27 = vector.broadcast %2 : f32 to vector<1x8x8xf32>
    %28 = arith.mulf %26, %27 : vector<1x8x8xf32>
    %c0_10 = arith.constant 0 : index
    %c0_11 = arith.constant 0 : index
    %c0_12 = arith.constant 0 : index
    %c0_13 = arith.constant 0 : index
    %29 = vector.load %arg5[%c0_10, %c0_11, %c0_12, %c0_13] : memref<1x1x8x8xf32, #tpu.memory_space<vmem>>, vector<1x1x8x8xf32>
    %30 = vector.shape_cast %29 : vector<1x1x8x8xf32> to vector<1x8x8xf32>
    %31 = vector.broadcast %8 : vector<1x1x8xf32> to vector<1x8x8xf32>
    %32 = arith.mulf %30, %31 : vector<1x8x8xf32>
    %33 = vector.broadcast %10 : vector<1x1x8xf32> to vector<1x8x8xf32>
    %34 = arith.addf %32, %33 : vector<1x8x8xf32>
    %cst_14 = arith.constant 0.000000e+00 : f32
    %35 = vector.broadcast %cst_14 : f32 to vector<1x8x8xf32>
    %36 = arith.maximumf %34, %35 : vector<1x8x8xf32>
    %37 = vector.broadcast %5 : f32 to vector<1x8x8xf32>
    %38 = arith.mulf %36, %37 : vector<1x8x8xf32>
    %cst_15 = arith.constant 0.000000e+00 : f32
    %39 = vector.broadcast %cst_15 : f32 to vector<6x10x8xf32>
    %c0_16 = arith.constant 0 : index
    %c0_17 = arith.constant 0 : index
    %c0_18 = arith.constant 0 : index
    %40 = vector.load %arg9[%c0_16, %c0_17, %c0_18] : memref<6x10x8xf32, #tpu.memory_space<vmem>>, vector<6x10x8xf32>
    tpu.vector_store %arg9[%c0_16, %c0_17, %c0_18], %39 {strides = array<i32>} : memref<6x10x8xf32, #tpu.memory_space<vmem>>, vector<6x10x8xf32>,
    %c0_19 = arith.constant 0 : index
    %c1 = arith.constant 1 : index
    %c0_20 = arith.constant 0 : index
    %41 = vector.load %arg9[%c0_19, %c1, %c0_20] : memref<6x10x8xf32, #tpu.memory_space<vmem>>, vector<1x8x8xf32>
    tpu.vector_store %arg9[%c0_19, %c1, %c0_20], %28 {strides = array<i32>} : memref<6x10x8xf32, #tpu.memory_space<vmem>>, vector<1x8x8xf32>,
    %c1_21 = arith.constant 1 : index
    %c1_22 = arith.constant 1 : index
    %c0_23 = arith.constant 0 : index
    %42 = vector.load %arg9[%c1_21, %c1_22, %c0_23] : memref<6x10x8xf32, #tpu.memory_space<vmem>>, vector<4x8x8xf32>
    tpu.vector_store %arg9[%c1_21, %c1_22, %c0_23], %18 {strides = array<i32>} : memref<6x10x8xf32, #tpu.memory_space<vmem>>, vector<4x8x8xf32>,
    %c5 = arith.constant 5 : index
    %c1_24 = arith.constant 1 : index
    %c0_25 = arith.constant 0 : index
    %43 = vector.load %arg9[%c5, %c1_24, %c0_25] : memref<6x10x8xf32, #tpu.memory_space<vmem>>, vector<1x8x8xf32>
    tpu.vector_store %arg9[%c5, %c1_24, %c0_25], %38 {strides = array<i32>} : memref<6x10x8xf32, #tpu.memory_space<vmem>>, vector<1x8x8xf32>,
    %c0_26 = arith.constant 0 : index
    %c0_27 = arith.constant 0 : index
    %c0_28 = arith.constant 0 : index
    %44 = vector.load %arg9[%c0_26, %c0_27, %c0_28] : memref<6x10x8xf32, #tpu.memory_space<vmem>>, vector<6x10x8xf32>
    %cst_29 = arith.constant 0.000000e+00 : f32
    %45 = vector.broadcast %cst_29 : f32 to vector<32x8xf32>
    %46 = vector.extract_strided_slice %44 {offsets = [0, 0, 0], sizes = [4, 8, 8], strides = [1, 1, 1]} : vector<6x10x8xf32> to vector<4x8x8xf32>
    %47 = vector.shape_cast %46 : vector<4x8x8xf32> to vector<32x8xf32>
    %c0_30 = arith.constant 0 : index
    %c0_31 = arith.constant 0 : index
    %c0_32 = arith.constant 0 : index
    %48 = vector.load %arg6[%c0_30, %c0_31, %c0_32] : memref<9x8x8xf32, #tpu.memory_space<vmem>>, vector<1x8x8xf32>
    %49 = vector.shape_cast %48 : vector<1x8x8xf32> to vector<8x8xf32>
    %cst_33 = arith.constant dense<0.000000e+00> : vector<32x8xf32>
    %50 = tpu.matmul %47, %49, %cst_33 {dimension_numbers = #tpu.dot_dimension_numbers<[1], [0], [0], [1], [0, 0, 1, 1], [], []>} : vector<32x8xf32>, vector<8x8xf32>, vector<32x8xf32> -> vector<32x8xf32>
    %51 = arith.addf %45, %50 : vector<32x8xf32>
    %52 = vector.extract_strided_slice %44 {offsets = [0, 1, 0], sizes = [4, 8, 8], strides = [1, 1, 1]} : vector<6x10x8xf32> to vector<4x8x8xf32>
    %53 = vector.shape_cast %52 : vector<4x8x8xf32> to vector<32x8xf32>
    %c1_34 = arith.constant 1 : index
    %c0_35 = arith.constant 0 : index
    %c0_36 = arith.constant 0 : index
    %54 = vector.load %arg6[%c1_34, %c0_35, %c0_36] : memref<9x8x8xf32, #tpu.memory_space<vmem>>, vector<1x8x8xf32>
    %55 = vector.shape_cast %54 : vector<1x8x8xf32> to vector<8x8xf32>
    %cst_37 = arith.constant dense<0.000000e+00> : vector<32x8xf32>
    %56 = tpu.matmul %53, %55, %cst_37 {dimension_numbers = #tpu.dot_dimension_numbers<[1], [0], [0], [1], [0, 0, 1, 1], [], []>} : vector<32x8xf32>, vector<8x8xf32>, vector<32x8xf32> -> vector<32x8xf32>
    %57 = arith.addf %51, %56 : vector<32x8xf32>
    %58 = vector.extract_strided_slice %44 {offsets = [0, 2, 0], sizes = [4, 8, 8], strides = [1, 1, 1]} : vector<6x10x8xf32> to vector<4x8x8xf32>
    %59 = vector.shape_cast %58 : vector<4x8x8xf32> to vector<32x8xf32>
    %c2 = arith.constant 2 : index
    %c0_38 = arith.constant 0 : index
    %c0_39 = arith.constant 0 : index
    %60 = vector.load %arg6[%c2, %c0_38, %c0_39] : memref<9x8x8xf32, #tpu.memory_space<vmem>>, vector<1x8x8xf32>
    %61 = vector.shape_cast %60 : vector<1x8x8xf32> to vector<8x8xf32>
    %cst_40 = arith.constant dense<0.000000e+00> : vector<32x8xf32>
    %62 = tpu.matmul %59, %61, %cst_40 {dimension_numbers = #tpu.dot_dimension_numbers<[1], [0], [0], [1], [0, 0, 1, 1], [], []>} : vector<32x8xf32>, vector<8x8xf32>, vector<32x8xf32> -> vector<32x8xf32>
    %63 = arith.addf %57, %62 : vector<32x8xf32>
    %64 = vector.extract_strided_slice %44 {offsets = [1, 0, 0], sizes = [4, 8, 8], strides = [1, 1, 1]} : vector<6x10x8xf32> to vector<4x8x8xf32>
    %65 = vector.shape_cast %64 : vector<4x8x8xf32> to vector<32x8xf32>
    %c3 = arith.constant 3 : index
    %c0_41 = arith.constant 0 : index
    %c0_42 = arith.constant 0 : index
    %66 = vector.load %arg6[%c3, %c0_41, %c0_42] : memref<9x8x8xf32, #tpu.memory_space<vmem>>, vector<1x8x8xf32>
    %67 = vector.shape_cast %66 : vector<1x8x8xf32> to vector<8x8xf32>
    %cst_43 = arith.constant dense<0.000000e+00> : vector<32x8xf32>
    %68 = tpu.matmul %65, %67, %cst_43 {dimension_numbers = #tpu.dot_dimension_numbers<[1], [0], [0], [1], [0, 0, 1, 1], [], []>} : vector<32x8xf32>, vector<8x8xf32>, vector<32x8xf32> -> vector<32x8xf32>
    %69 = arith.addf %63, %68 : vector<32x8xf32>
    %70 = vector.extract_strided_slice %44 {offsets = [1, 1, 0], sizes = [4, 8, 8], strides = [1, 1, 1]} : vector<6x10x8xf32> to vector<4x8x8xf32>
    %71 = vector.shape_cast %70 : vector<4x8x8xf32> to vector<32x8xf32>
    %c4 = arith.constant 4 : index
    %c0_44 = arith.constant 0 : index
    %c0_45 = arith.constant 0 : index
    %72 = vector.load %arg6[%c4, %c0_44, %c0_45] : memref<9x8x8xf32, #tpu.memory_space<vmem>>, vector<1x8x8xf32>
    %73 = vector.shape_cast %72 : vector<1x8x8xf32> to vector<8x8xf32>
    %cst_46 = arith.constant dense<0.000000e+00> : vector<32x8xf32>
    %74 = tpu.matmul %71, %73, %cst_46 {dimension_numbers = #tpu.dot_dimension_numbers<[1], [0], [0], [1], [0, 0, 1, 1], [], []>} : vector<32x8xf32>, vector<8x8xf32>, vector<32x8xf32> -> vector<32x8xf32>
    %75 = arith.addf %69, %74 : vector<32x8xf32>
    %76 = vector.extract_strided_slice %44 {offsets = [1, 2, 0], sizes = [4, 8, 8], strides = [1, 1, 1]} : vector<6x10x8xf32> to vector<4x8x8xf32>
    %77 = vector.shape_cast %76 : vector<4x8x8xf32> to vector<32x8xf32>
    %c5_47 = arith.constant 5 : index
    %c0_48 = arith.constant 0 : index
    %c0_49 = arith.constant 0 : index
    %78 = vector.load %arg6[%c5_47, %c0_48, %c0_49] : memref<9x8x8xf32, #tpu.memory_space<vmem>>, vector<1x8x8xf32>
    %79 = vector.shape_cast %78 : vector<1x8x8xf32> to vector<8x8xf32>
    %cst_50 = arith.constant dense<0.000000e+00> : vector<32x8xf32>
    %80 = tpu.matmul %77, %79, %cst_50 {dimension_numbers = #tpu.dot_dimension_numbers<[1], [0], [0], [1], [0, 0, 1, 1], [], []>} : vector<32x8xf32>, vector<8x8xf32>, vector<32x8xf32> -> vector<32x8xf32>
    %81 = arith.addf %75, %80 : vector<32x8xf32>
    %82 = vector.extract_strided_slice %44 {offsets = [2, 0, 0], sizes = [4, 8, 8], strides = [1, 1, 1]} : vector<6x10x8xf32> to vector<4x8x8xf32>
    %83 = vector.shape_cast %82 : vector<4x8x8xf32> to vector<32x8xf32>
    %c6 = arith.constant 6 : index
    %c0_51 = arith.constant 0 : index
    %c0_52 = arith.constant 0 : index
    %84 = vector.load %arg6[%c6, %c0_51, %c0_52] : memref<9x8x8xf32, #tpu.memory_space<vmem>>, vector<1x8x8xf32>
    %85 = vector.shape_cast %84 : vector<1x8x8xf32> to vector<8x8xf32>
    %cst_53 = arith.constant dense<0.000000e+00> : vector<32x8xf32>
    %86 = tpu.matmul %83, %85, %cst_53 {dimension_numbers = #tpu.dot_dimension_numbers<[1], [0], [0], [1], [0, 0, 1, 1], [], []>} : vector<32x8xf32>, vector<8x8xf32>, vector<32x8xf32> -> vector<32x8xf32>
    %87 = arith.addf %81, %86 : vector<32x8xf32>
    %88 = vector.extract_strided_slice %44 {offsets = [2, 1, 0], sizes = [4, 8, 8], strides = [1, 1, 1]} : vector<6x10x8xf32> to vector<4x8x8xf32>
    %89 = vector.shape_cast %88 : vector<4x8x8xf32> to vector<32x8xf32>
    %c7 = arith.constant 7 : index
    %c0_54 = arith.constant 0 : index
    %c0_55 = arith.constant 0 : index
    %90 = vector.load %arg6[%c7, %c0_54, %c0_55] : memref<9x8x8xf32, #tpu.memory_space<vmem>>, vector<1x8x8xf32>
    %91 = vector.shape_cast %90 : vector<1x8x8xf32> to vector<8x8xf32>
    %cst_56 = arith.constant dense<0.000000e+00> : vector<32x8xf32>
    %92 = tpu.matmul %89, %91, %cst_56 {dimension_numbers = #tpu.dot_dimension_numbers<[1], [0], [0], [1], [0, 0, 1, 1], [], []>} : vector<32x8xf32>, vector<8x8xf32>, vector<32x8xf32> -> vector<32x8xf32>
    %93 = arith.addf %87, %92 : vector<32x8xf32>
    %94 = vector.extract_strided_slice %44 {offsets = [2, 2, 0], sizes = [4, 8, 8], strides = [1, 1, 1]} : vector<6x10x8xf32> to vector<4x8x8xf32>
    %95 = vector.shape_cast %94 : vector<4x8x8xf32> to vector<32x8xf32>
    %c8 = arith.constant 8 : index
    %c0_57 = arith.constant 0 : index
    %c0_58 = arith.constant 0 : index
    %96 = vector.load %arg6[%c8, %c0_57, %c0_58] : memref<9x8x8xf32, #tpu.memory_space<vmem>>, vector<1x8x8xf32>
    %97 = vector.shape_cast %96 : vector<1x8x8xf32> to vector<8x8xf32>
    %cst_59 = arith.constant dense<0.000000e+00> : vector<32x8xf32>
    %98 = tpu.matmul %95, %97, %cst_59 {dimension_numbers = #tpu.dot_dimension_numbers<[1], [0], [0], [1], [0, 0, 1, 1], [], []>} : vector<32x8xf32>, vector<8x8xf32>, vector<32x8xf32> -> vector<32x8xf32>
    %99 = arith.addf %93, %98 : vector<32x8xf32>
    %c0_60 = arith.constant 0 : index
    %c0_61 = arith.constant 0 : index
    %c0_62 = arith.constant 0 : index
    %100 = vector.load %arg7[%c0_60, %c0_61, %c0_62] : memref<1x32x8xf32, #tpu.memory_space<vmem>>, vector<1x32x8xf32>
    %101 = vector.shape_cast %100 : vector<1x32x8xf32> to vector<32x8xf32>
    %102 = vector.shape_cast %99 : vector<32x8xf32> to vector<1x32x8xf32>
    tpu.vector_store %arg7[%c0_60, %c0_61, %c0_62], %102 {strides = array<i32>} : memref<1x32x8xf32, #tpu.memory_space<vmem>>, vector<1x32x8xf32>,
    %cst_63 = arith.constant dense<0.000000e+00> : vector<8xf32>
    %103 = vector.multi_reduction <add>, %99, %cst_63 [0] : vector<32x8xf32> to vector<8xf32>
    %104 = vector.shape_cast %103 : vector<8xf32> to vector<1x8xf32>
    %c0_64 = arith.constant 0 : index
    %c0_65 = arith.constant 0 : index
    %c0_66 = arith.constant 0 : index
    %c0_67 = arith.constant 0 : index
    %105 = vector.load %arg8[%c0_64, %c0_65, %c0_66, %c0_67] : memref<1x1x2x8xf32, #tpu.memory_space<vmem>>, vector<1x1x1x8xf32>
    %106 = vector.shape_cast %105 : vector<1x1x1x8xf32> to vector<1x8xf32>
    %107 = vector.shape_cast %104 : vector<1x8xf32> to vector<1x1x1x8xf32>
    tpu.vector_store %arg8[%c0_64, %c0_65, %c0_66, %c0_67], %107 {strides = array<i32>} : memref<1x1x2x8xf32, #tpu.memory_space<vmem>>, vector<1x1x1x8xf32>,
    %108 = arith.mulf %99, %99 : vector<32x8xf32>
    %cst_68 = arith.constant dense<0.000000e+00> : vector<8xf32>
    %109 = vector.multi_reduction <add>, %108, %cst_68 [0] : vector<32x8xf32> to vector<8xf32>
    %110 = vector.shape_cast %109 : vector<8xf32> to vector<1x8xf32>
    %c0_69 = arith.constant 0 : index
    %c0_70 = arith.constant 0 : index
    %c1_71 = arith.constant 1 : index
    %c0_72 = arith.constant 0 : index
    %111 = vector.load %arg8[%c0_69, %c0_70, %c1_71, %c0_72] : memref<1x1x2x8xf32, #tpu.memory_space<vmem>>, vector<1x1x1x8xf32>
    %112 = vector.shape_cast %111 : vector<1x1x1x8xf32> to vector<1x8xf32>
    %113 = vector.shape_cast %110 : vector<1x8xf32> to vector<1x1x1x8xf32>
    tpu.vector_store %arg8[%c0_69, %c0_70, %c1_71, %c0_72], %113 {strides = array<i32>} : memref<1x1x2x8xf32, #tpu.memory_space<vmem>>, vector<1x1x1x8xf32>,
    return
  }
  func.func @transform_0(%arg0: i32, %arg1: i32) -> (i32, i32) {
    %c0_i32 = arith.constant 0 : i32
    %c0_i32_0 = arith.constant 0 : i32
    %c0_i32_1 = arith.constant 0 : i32
    return %c0_i32, %c0_i32_0 : i32, i32
  }
  func.func @transform_1(%arg0: i32, %arg1: i32) -> (i32, i32, i32, i32) {
    %c0_i32 = arith.constant 0 : i32
    %c0_i32_0 = arith.constant 0 : i32
    %c0_i32_1 = arith.constant 0 : i32
    return %arg0, %arg1, %c0_i32, %c0_i32_0 : i32, i32, i32, i32
  }
  func.func @transform_2(%arg0: i32, %arg1: i32) -> (i32, i32, i32, i32) {
    %c4_i32 = arith.constant 4 : i32
    %0 = arith.muli %arg1, %c4_i32 : i32
    %c1_i32 = arith.constant 1 : i32
    %1 = arith.subi %0, %c1_i32 : i32
    %c0_i32 = arith.constant 0 : i32
    %2 = arith.maxsi %1, %c0_i32 : i32
    %c0_i32_0 = arith.constant 0 : i32
    %c0_i32_1 = arith.constant 0 : i32
    %c0_i32_2 = arith.constant 0 : i32
    return %arg0, %2, %c0_i32_0, %c0_i32_1 : i32, i32, i32, i32
  }
  func.func @transform_3(%arg0: i32, %arg1: i32) -> (i32, i32, i32, i32) {
    %c4_i32 = arith.constant 4 : i32
    %0 = arith.muli %arg1, %c4_i32 : i32
    %c4_i32_0 = arith.constant 4 : i32
    %1 = arith.addi %0, %c4_i32_0 : i32
    %c7_i32 = arith.constant 7 : i32
    %2 = arith.minsi %1, %c7_i32 : i32
    %c0_i32 = arith.constant 0 : i32
    %c0_i32_1 = arith.constant 0 : i32
    %c0_i32_2 = arith.constant 0 : i32
    return %arg0, %2, %c0_i32, %c0_i32_1 : i32, i32, i32, i32
  }
  func.func @transform_4(%arg0: i32, %arg1: i32) -> (i32, i32, i32) {
    %c0_i32 = arith.constant 0 : i32
    %c0_i32_0 = arith.constant 0 : i32
    %c0_i32_1 = arith.constant 0 : i32
    %c0_i32_2 = arith.constant 0 : i32
    return %c0_i32, %c0_i32_0, %c0_i32_1 : i32, i32, i32
  }
  func.func @transform_5(%arg0: i32, %arg1: i32) -> (i32, i32, i32) {
    %c0_i32 = arith.constant 0 : i32
    %c0_i32_0 = arith.constant 0 : i32
    return %arg0, %arg1, %c0_i32 : i32, i32, i32
  }
  func.func @transform_6(%arg0: i32, %arg1: i32) -> (i32, i32, i32, i32) {
    %c0_i32 = arith.constant 0 : i32
    %c0_i32_0 = arith.constant 0 : i32
    %c0_i32_1 = arith.constant 0 : i32
    return %arg0, %arg1, %c0_i32, %c0_i32_0 : i32, i32, i32, i32
  }
}

module attributes {stable_mosaic.version = 11 : i64} {
  func.func @_bn_relu_kernel(%arg0: i32, %arg1: memref<8x128xf32, #tpu.memory_space<vmem>>, %arg2: memref<2x128xf32, #tpu.memory_space<vmem>>, %arg3: memref<8x128xf32, #tpu.memory_space<vmem>>) attributes {dimension_semantics = [#tpu.dimension_semantics<parallel>], iteration_bounds = array<i64: 1>, scalar_prefetch = 0 : i64, scratch_operands = 0 : i64, tpu.core_type = #tpu.core_type<tc>, window_params = [{transform_indices = @transform_0, window_bounds = array<i64: 8, 128>}, {pipeline_mode = #tpu.pipeline_mode<synchronous>, transform_indices = @transform_1, window_bounds = array<i64: 2, 128>}, {transform_indices = @transform_2, window_bounds = array<i64: 8, 128>}]} {
    %c0 = arith.constant 0 : index
    %c0_0 = arith.constant 0 : index
    %0 = vector.load %arg2[%c0, %c0_0] : memref<2x128xf32, #tpu.memory_space<vmem>>, vector<2x128xf32>
    %c0_1 = arith.constant 0 : index
    %c0_2 = arith.constant 0 : index
    %1 = vector.load %arg1[%c0_1, %c0_2] : memref<8x128xf32, #tpu.memory_space<vmem>>, vector<8x128xf32>
    %2 = vector.extract_strided_slice %0 {offsets = [0, 0], sizes = [1, 128], strides = [1, 1]} : vector<2x128xf32> to vector<1x128xf32>
    %3 = vector.broadcast %2 : vector<1x128xf32> to vector<8x128xf32>
    %4 = arith.mulf %1, %3 : vector<8x128xf32>
    %5 = vector.extract_strided_slice %0 {offsets = [1, 0], sizes = [1, 128], strides = [1, 1]} : vector<2x128xf32> to vector<1x128xf32>
    %6 = vector.broadcast %5 : vector<1x128xf32> to vector<8x128xf32>
    %7 = arith.addf %4, %6 : vector<8x128xf32>
    %cst = arith.constant 0.000000e+00 : f32
    %8 = vector.broadcast %cst : f32 to vector<8x128xf32>
    %9 = arith.maximumf %7, %8 : vector<8x128xf32>
    %c0_3 = arith.constant 0 : index
    %c0_4 = arith.constant 0 : index
    %10 = vector.load %arg3[%c0_3, %c0_4] : memref<8x128xf32, #tpu.memory_space<vmem>>, vector<8x128xf32>
    tpu.vector_store %arg3[%c0_3, %c0_4], %9 {strides = array<i32>} : memref<8x128xf32, #tpu.memory_space<vmem>>, vector<8x128xf32>,
    return
  }
  func.func @transform_0(%arg0: i32) -> (i32, i32) {
    %c0_i32 = arith.constant 0 : i32
    %c0_i32_0 = arith.constant 0 : i32
    return %arg0, %c0_i32 : i32, i32
  }
  func.func @transform_1(%arg0: i32) -> (i32, i32) {
    %c0_i32 = arith.constant 0 : i32
    %c0_i32_0 = arith.constant 0 : i32
    %c0_i32_1 = arith.constant 0 : i32
    return %c0_i32, %c0_i32_0 : i32, i32
  }
  func.func @transform_2(%arg0: i32) -> (i32, i32) {
    %c0_i32 = arith.constant 0 : i32
    %c0_i32_0 = arith.constant 0 : i32
    return %arg0, %c0_i32 : i32, i32
  }
}

</mosaic_0001>

<llo_original>
// kernel: tile.9
$region0: #{tile.9}
  %s0 = inlined_call_operand.vmem [shape: f32[2,16,8], index: 0, kind: input, shape index: {}]
  %s1 = inlined_call_operand.vmem [shape: f32[2,128], index: 1, kind: output, shape index: {}]
  $region1: #{tile.9} parent=0
    #allocation0 [shape = 'u8[4096]{0}', space=vmem, size = 0x1000, scoped, tag = 'scoped mem for output reshape']
    %s2 = smov 3
    %v3 = vld [vmem:[%s0] ss:$16 sm:%s2]
    %vm4 = vcmask 64512
    %5 = vst.msk [vmem:[#allocation0] sm:$0x3] %vm4, %v3
    %s6 = scalar_lea.vmem %s0, 15
    %s7 = smov 3
    %v8 = vld [vmem:[%s6] ss:$16 sm:%s7]
    %9 = vrot.lane.b32.xlu0 %v8, 120
    %v10 = vpop.permute.xlu0 %9
    %vm11 = vcmask 1048512
    %12 = vst.msk [vmem:[#allocation0] sm:$0x3] %vm11, %v10
    %s13 = scalar_lea.vmem %s0, 14
    %s14 = smov 3
    %v15 = vld [vmem:[%s13] ss:$16 sm:%s14]
    %16 = vrot.lane.b32.xlu0 %v15, 112
    %v17 = vpop.permute.xlu0 %16
    %vm18 = vcmask 982912
    %19 = vst.msk [vmem:[#allocation0] sm:$0x3] %vm18, %v17
    %s20 = scalar_lea.vmem %s0, 13
    %s21 = smov 3
    %v22 = vld [vmem:[%s20] ss:$16 sm:%s21]
    %23 = vrot.lane.b32.xlu0 %v22, 104
    %v24 = vpop.permute.xlu0 %23
    %vm25 = vcmask 917312
    %26 = vst.msk [vmem:[#allocation0] sm:$0x3] %vm25, %v24
    %s27 = scalar_lea.vmem %s0, 12
    %s28 = smov 3
    %v29 = vld [vmem:[%s27] ss:$16 sm:%s28]
    %30 = vrot.lane.b32.xlu0 %v29, 96
    %v31 = vpop.permute.xlu0 %30
    %vm32 = vcmask 851712
    %33 = vst.msk [vmem:[#allocation0] sm:$0x3] %vm32, %v31
    %s34 = scalar_lea.vmem %s0, 11
    %s35 = smov 3
    %v36 = vld [vmem:[%s34] ss:$16 sm:%s35]
    %37 = vrot.lane.b32.xlu0 %v36, 88
    %v38 = vpop.permute.xlu0 %37
    %vm39 = vcmask 786112
    %40 = vst.msk [vmem:[#allocation0] sm:$0x3] %vm39, %v38
    %s41 = scalar_lea.vmem %s0, 10
    %s42 = smov 3
    %v43 = vld [vmem:[%s41] ss:$16 sm:%s42]
    %44 = vrot.lane.b32.xlu0 %v43, 80
    %v45 = vpop.permute.xlu0 %44
    %vm46 = vcmask 720512
    %47 = vst.msk [vmem:[#allocation0] sm:$0x3] %vm46, %v45
    %s48 = scalar_lea.vmem %s0, 9
    %s49 = smov 3
    %v50 = vld [vmem:[%s48] ss:$16 sm:%s49]
    %51 = vrot.lane.b32.xlu0 %v50, 72
    %v52 = vpop.permute.xlu0 %51
    %vm53 = vcmask 654912
    %54 = vst.msk [vmem:[#allocation0] sm:$0x3] %vm53, %v52
    %s55 = scalar_lea.vmem %s0, 8
    %s56 = smov 3
    %v57 = vld [vmem:[%s55] ss:$16 sm:%s56]
    %58 = vrot.lane.b32.xlu0 %v57, 64
    %v59 = vpop.permute.xlu0 %58
    %vm60 = vcmask 589312
    %61 = vst.msk [vmem:[#allocation0] sm:$0x3] %vm60, %v59
    %s62 = scalar_lea.vmem %s0, 7
    %s63 = smov 3
    %v64 = vld [vmem:[%s62] ss:$16 sm:%s63]
    %65 = vrot.lane.b32.xlu0 %v64, 56
    %v66 = vpop.permute.xlu0 %65
    %vm67 = vcmask 523712
    %68 = vst.msk [vmem:[#allocation0] sm:$0x3] %vm67, %v66
    %s69 = scalar_lea.vmem %s0, 6
    %s70 = smov 3
    %v71 = vld [vmem:[%s69] ss:$16 sm:%s70]
    %72 = vrot.lane.b32.xlu0 %v71, 48
    %v73 = vpop.permute.xlu0 %72
    %vm74 = vcmask 458112
    %75 = vst.msk [vmem:[#allocation0] sm:$0x3] %vm74, %v73
    %s76 = scalar_lea.vmem %s0, 5
    %s77 = smov 3
    %v78 = vld [vmem:[%s76] ss:$16 sm:%s77]
    %79 = vrot.lane.b32.xlu0 %v78, 40
    %v80 = vpop.permute.xlu0 %79
    %vm81 = vcmask 392512
    %82 = vst.msk [vmem:[#allocation0] sm:$0x3] %vm81, %v80
    %s83 = scalar_lea.vmem %s0, 4
    %s84 = smov 3
    %v85 = vld [vmem:[%s83] ss:$16 sm:%s84]
    %86 = vrot.lane.b32.xlu0 %v85, 32
    %v87 = vpop.permute.xlu0 %86
    %vm88 = vcmask 326912
    %89 = vst.msk [vmem:[#allocation0] sm:$0x3] %vm88, %v87
    %s90 = scalar_lea.vmem %s0, 3
    %s91 = smov 3
    %v92 = vld [vmem:[%s90] ss:$16 sm:%s91]
    %93 = vrot.lane.b32.xlu0 %v92, 24
    %v94 = vpop.permute.xlu0 %93
    %vm95 = vcmask 261312
    %96 = vst.msk [vmem:[#allocation0] sm:$0x3] %vm95, %v94
    %s97 = scalar_lea.vmem %s0, 2
    %s98 = smov 3
    %v99 = vld [vmem:[%s97] ss:$16 sm:%s98]
    %100 = vrot.lane.b32.xlu0 %v99, 16
    %v101 = vpop.permute.xlu0 %100
    %vm102 = vcmask 195712
    %103 = vst.msk [vmem:[#allocation0] sm:$0x3] %vm102, %v101
    %s104 = scalar_lea.vmem %s0, 1
    %s105 = smov 3
    %v106 = vld [vmem:[%s104] ss:$16 sm:%s105]
    %107 = vrot.lane.b32.xlu0 %v106, 8
    %v108 = vpop.permute.xlu0 %107
    %vm109 = vcmask 130112
    %110 = vst.msk [vmem:[#allocation0] sm:$0x3] %vm109, %v108
    %s112 = ssub.s32 4, 1
    %v113 = vld [vmem:[#allocation0] sm:%s112]
    %s115 = ssub.s32 4, 1
    %116 = vst [vmem:[%s1] sm:%s115] %v113

// kernel: down_conv2d_forward.5
$region0: #{down_conv2d_forward.5}
  #allocation0 [shape = 'u32[]', space=smem, size = 0x4, offset = 0x4, fixed_abs, tag = 'smem constant byte address 0x4 - core index']
  #allocation1 [shape = 'u32[72,128]{1,0:T(1,128)}', space=vmem, size = 0x9000, scoped, tag = 'internal scratch']
  %s0 = inlined_call_operand.vmem [shape: f32[8,128], index: 0, kind: input, shape index: {}]
  %s1 = inlined_call_operand.vmem [shape: f32[2,128], index: 1, kind: input, shape index: {}]
  %s2 = inlined_call_operand.vmem [shape: f32[8,128], index: 2, kind: output, shape index: {}]
  %s3 = sld [smem:[#allocation0]]
  $region18: #{down_conv2d_forward.5} parent=0
    _
  %s5 = ssub.s32 1, %s3
  %s6 = scalar_select 0, %s5, %s3
  // Predicated region
  $region2: #{down_conv2d_forward.5} parent=0 // pred_check
    _
  $region3: #{down_conv2d_forward.5} parent=0 // pred_check_branch
    %8 = sbr.rel (0) target = $region5
  $region4: #{down_conv2d_forward.5} parent=0 // pred_region
    _
  $region5: #{down_conv2d_forward.5} parent=0 // pred_fallthru
    _
  // Predicated region
  $region6: #{down_conv2d_forward.5} parent=0 // pred_check
    _
  $region7: #{down_conv2d_forward.5} parent=0 // pred_check_branch
    %10 = sbr.rel (0) target = $region9
  $region8: #{down_conv2d_forward.5} parent=0 // pred_region
    _
  $region9: #{down_conv2d_forward.5} parent=0 // pred_fallthru
    _
  %v11 = vld [vmem:[%s1] sm:$0x3]
  %v12 = vld [vmem:[%s0] sm:$0xff]
  %v13 = vperm.slane %v11, 0
  %v14 = vmul.f32 %v12, %v13
  %v15 = vperm.slane %v11, 1
  %v16 = vadd.f32 %v14, %v15
  %v17 = vmax.f32 %v16, 0.0
  %18 = vst [vmem:[%s2] sm:$0xff] %v17
  // Predicated region
  $region10: #{down_conv2d_forward.5} parent=0 // pred_check
    _
  $region11: #{down_conv2d_forward.5} parent=0 // pred_check_branch
    %20 = sbr.rel (0) target = $region13
  $region12: #{down_conv2d_forward.5} parent=0 // pred_region
    _
  $region13: #{down_conv2d_forward.5} parent=0 // pred_fallthru
    _
  // Predicated region
  $region14: #{down_conv2d_forward.5} parent=0 // pred_check
    _
  $region15: #{down_conv2d_forward.5} parent=0 // pred_check_branch
    %22 = sbr.rel (0) target = $region17
  $region16: #{down_conv2d_forward.5} parent=0 // pred_region
    _
  $region17: #{down_conv2d_forward.5} parent=0 // pred_fallthru
    _

// kernel: down_conv2d_forward.4
$region0: #{down_conv2d_forward.4}
  #allocation0 [shape = 'u32[]', space=smem, size = 0x4, offset = 0x4, fixed_abs, tag = 'smem constant byte address 0x4 - core index']
  #allocation1 [shape = 'u32[72,128]{1,0:T(1,128)}', space=vmem, size = 0x9000, scoped, tag = 'internal scratch']
  #allocation2 [shape = 'f32[6,10,8]{2,1,0:T(8,128)}', space=vmem, size = 0xc000, scoped, tag = 'scratch operand']
  %s0 = inlined_call_operand.vmem [shape: f32[2,8], index: 0, kind: input, shape index: {}]
  %s1 = inlined_call_operand.vmem [shape: f32[2,8,8,8], index: 1, kind: input, shape index: {}, may-alias: {1,2,3}]
  %s2 = inlined_call_operand.vmem [shape: f32[2,8,8,8], index: 2, kind: input, shape index: {}, may-alias: {1,2,3}]
  %s3 = inlined_call_operand.vmem [shape: f32[2,8,8,8], index: 3, kind: input, shape index: {}, may-alias: {1,2,3}]
  %s4 = inlined_call_operand.vmem [shape: f32[9,8,8], index: 4, kind: input, shape index: {}]
  %s5 = inlined_call_operand.vmem [shape: f32[2,64,8], index: 5, kind: output, shape index: {0}]
  %s6 = inlined_call_operand.vmem [shape: f32[2,2,2,8], index: 6, kind: output, shape index: {1}]
  %7 = xla_tuple %s5, %s6
  %s8 = sld [smem:[#allocation0]]
  $region61: #{down_conv2d_forward.4} parent=0
    _
  %s10 = ssub.s32 1, %s8
  %s11 = scalar_select 0, %s10, %s8
  loop: start=0, step=1, limit=6
  $region2: #{down_conv2d_forward.4} parent=0 // loop_pre_header
    _
  $region3: #{down_conv2d_forward.4} parent=0 // loop_header
    %s13 = sphi 0, %s17
    %p14 = scmp.ge.s32.totalorder %s13, 6
    %s20 = sphi 0, %s32
    %s21 = sphi 0, %s28
    %s22 = sphi 0, %s20
    %s23 = sphi 0, %s21
    %s24 = sphi 0, %s22
    %s25 = sphi 0, %s23
    %s33 = sphi 0, %s33
    %s35 = sphi 0, %s33
    %s36 = sphi 0, %s35
    %s50 = sphi 0, %s36
    %s58 = sphi 0, %s60
    %s61 = sphi 0, %s58
    %s62 = sphi 0, %s61
    %s78 = sphi 0, %s62
    %s94 = sphi 0, %s96
    %s97 = sphi 0, %s94
    %s98 = sphi 0, %s97
    %s114 = sphi 0, %s98
    %s130 = sphi 0, %s132
    %s133 = sphi 0, %s130
    %s134 = sphi 0, %s133
    %s150 = sphi 0, %s134
    %s154 = sphi 0, %s154
    %s156 = sphi 0, %s154
    %s157 = sphi 0, %s156
    %s171 = sphi 0, %s157
    %s179 = sphi 0, %s181
    %s182 = sphi 0, %s179
    %s183 = sphi 0, %s182
    %s199 = sphi 0, %s183
    %s207 = sphi 0, %s209
    %s210 = sphi 0, %s207
    %s211 = sphi 0, %s210
    %s227 = sphi 0, %s211
  $region4: #{down_conv2d_forward.4} parent=0 // loop_header_branch
    %16 = sbr.rel (%p14) target = $region8
  $region5: #{down_conv2d_forward.4} parent=0 // loop_body
    %s18 = ssub.s32 %s13, 1
    %s19 = ssub.s32 %s13, 2
    %s26 = sadd.s32 1, %s21
    %p27 = scmp.ge.s32.totalorder %s26, 2
    %s28 = scalar_select %p27, 0, %s26
    %s29 = sadd.s32 1, %s20
    %s30 = scalar_select %p27, %s29, %s20
    %p31 = scmp.ge.s32.totalorder %s30, 2
    %s32 = scalar_select %p31, 0, %s30
    %s34 = sadd.s32 %s33, 1
    %p37 = scmp.eq.s32.totalorder %s13, 3
    %p38 = scmp.ne.s32.totalorder %s33, %s35
    %p39 = scmp.eq.s32.totalorder %s13, 0
    %p40 = por %p38, %p39
    %p41 = scmp.ne.s32.totalorder %s33, %s35
    %p42 = scmp.eq.s32.totalorder %s18, 3
    %p43 = por %p41, %p42
    %p44 = scmp.ne.s32.totalorder %s35, %s36
    %p45 = scmp.eq.s32.totalorder %s18, 0
    %p46 = por %p44, %p45
    %p47 = scmp.ne.s32.totalorder %s35, %s36
    %p48 = scmp.eq.s32.totalorder %s19, 3
    %p49 = por %p47, %p48
    %p51 = scmp.ne.s32.totalorder %s36, %s50
    %p52 = scmp.eq.s32.totalorder %s19, 0
    %p53 = por %p51, %p52
    %s54 = ssub.s32 %s20, %s32
    %s55 = ssub.s32 %s21, %s28
    %s56 = sor.u32 %s54, %s55
    %p57 = scmp.eq.s32.totalorder %s56, 0
    %s59 = sadd.s32 %s58, 1
    %s60 = scalar_select %p57, %s58, %s59
    %p63 = pneg %p57
    %p64 = scmp.eq.s32.totalorder %s13, 3
    %p65 = por %p63, %p64
    %p66 = scmp.ne.s32.totalorder %s58, %s61
    %p67 = scmp.eq.s32.totalorder %s13, 0
    %p68 = por %p66, %p67
    %p69 = scmp.ne.s32.totalorder %s58, %s61
    %p70 = scmp.eq.s32.totalorder %s18, 3
    %p71 = por %p69, %p70
    %p72 = scmp.ne.s32.totalorder %s61, %s62
    %p73 = scmp.eq.s32.totalorder %s18, 0
    %p74 = por %p72, %p73
    %p75 = scmp.ne.s32.totalorder %s61, %s62
    %p76 = scmp.eq.s32.totalorder %s19, 3
    %p77 = por %p75, %p76
    %p79 = scmp.ne.s32.totalorder %s62, %s78
    %p80 = scmp.eq.s32.totalorder %s19, 0
    %p81 = por %p79, %p80
    %s82 = smul.u32 %s21, 4
    %s83 = ssub.s32 %s82, 1
    %p84 = scmp.gt.s32.totalorder %s83, 0
    %s85 = scalar_select %p84, %s83, 0
    %s86 = smul.u32 %s28, 4
    %s87 = ssub.s32 %s86, 1
    %p88 = scmp.gt.s32.totalorder %s87, 0
    %s89 = scalar_select %p88, %s87, 0
    %s90 = ssub.s32 %s20, %s32
    %s91 = ssub.s32 %s85, %s89
    %s92 = sor.u32 %s90, %s91
    %p93 = scmp.eq.s32.totalorder %s92, 0
    %s95 = sadd.s32 %s94, 1
    %s96 = scalar_select %p93, %s94, %s95
    %p99 = pneg %p93
    %p100 = scmp.eq.s32.totalorder %s13, 3
    %p101 = por %p99, %p100
    %p102 = scmp.ne.s32.totalorder %s94, %s97
    %p103 = scmp.eq.s32.totalorder %s13, 0
    %p104 = por %p102, %p103
    %p105 = scmp.ne.s32.totalorder %s94, %s97
    %p106 = scmp.eq.s32.totalorder %s18, 3
    %p107 = por %p105, %p106
    %p108 = scmp.ne.s32.totalorder %s97, %s98
    %p109 = scmp.eq.s32.totalorder %s18, 0
    %p110 = por %p108, %p109
    %p111 = scmp.ne.s32.totalorder %s97, %s98
    %p112 = scmp.eq.s32.totalorder %s19, 3
    %p113 = por %p111, %p112
    %p115 = scmp.ne.s32.totalorder %s98, %s114
    %p116 = scmp.eq.s32.totalorder %s19, 0
    %p117 = por %p115, %p116
    %s118 = smul.u32 %s21, 4
    %s119 = sadd.s32 %s118, 4
    %p120 = scmp.lt.s32.totalorder %s119, 7
    %s121 = scalar_select %p120, %s119, 7
    %s122 = smul.u32 %s28, 4
    %s123 = sadd.s32 %s122, 4
    %p124 = scmp.lt.s32.totalorder %s123, 7
    %s125 = scalar_select %p124, %s123, 7
    %s126 = ssub.s32 %s20, %s32
    %s127 = ssub.s32 %s121, %s125
    %s128 = sor.u32 %s126, %s127
    %p129 = scmp.eq.s32.totalorder %s128, 0
    %s131 = sadd.s32 %s130, 1
    %s132 = scalar_select %p129, %s130, %s131
    %p135 = pneg %p129
    %p136 = scmp.eq.s32.totalorder %s13, 3
    %p137 = por %p135, %p136
    %p138 = scmp.ne.s32.totalorder %s130, %s133
    %p139 = scmp.eq.s32.totalorder %s13, 0
    %p140 = por %p138, %p139
    %p141 = scmp.ne.s32.totalorder %s130, %s133
    %p142 = scmp.eq.s32.totalorder %s18, 3
    %p143 = por %p141, %p142
    %p144 = scmp.ne.s32.totalorder %s133, %s134
    %p145 = scmp.eq.s32.totalorder %s18, 0
    %p146 = por %p144, %p145
    %p147 = scmp.ne.s32.totalorder %s133, %s134
    %p148 = scmp.eq.s32.totalorder %s19, 3
    %p149 = por %p147, %p148
    %p151 = scmp.ne.s32.totalorder %s134, %s150
    %p152 = scmp.eq.s32.totalorder %s19, 0
    %p153 = por %p151, %p152
    %s155 = sadd.s32 %s154, 1
    %p158 = scmp.eq.s32.totalorder %s13, 3
    %p159 = scmp.ne.s32.totalorder %s154, %s156
    %p160 = scmp.eq.s32.totalorder %s13, 0
    %p161 = por %p159, %p160
    %p162 = scmp.ne.s32.totalorder %s154, %s156
    %p163 = scmp.eq.s32.totalorder %s18, 3
    %p164 = por %p162, %p163
    %p165 = scmp.ne.s32.totalorder %s156, %s157
    %p166 = scmp.eq.s32.totalorder %s18, 0
    %p167 = por %p165, %p166
    %p168 = scmp.ne.s32.totalorder %s156, %s157
    %p169 = scmp.eq.s32.totalorder %s19, 3
    %p170 = por %p168, %p169
    %p172 = scmp.ne.s32.totalorder %s157, %s171
    %p173 = scmp.eq.s32.totalorder %s19, 0
    %p174 = por %p172, %p173
    %s175 = ssub.s32 %s20, %s32
    %s176 = ssub.s32 %s21, %s28
    %s177 = sor.u32 %s175, %s176
    %p178 = scmp.eq.s32.totalorder %s177, 0
    %s180 = sadd.s32 %s179, 1
    %s181 = scalar_select %p178, %s179, %s180
    %p184 = pneg %p178
    %p185 = scmp.eq.s32.totalorder %s13, 3
    %p186 = por %p184, %p185
    %p187 = scmp.ne.s32.totalorder %s179, %s182
    %p188 = scmp.eq.s32.totalorder %s13, 0
    %p189 = por %p187, %p188
    %p190 = scmp.ne.s32.totalorder %s179, %s182
    %p191 = scmp.eq.s32.totalorder %s18, 3
    %p192 = por %p190, %p191
    %p193 = scmp.ne.s32.totalorder %s182, %s183
    %p194 = scmp.eq.s32.totalorder %s18, 0
    %p195 = por %p193, %p194
    %p196 = scmp.ne.s32.totalorder %s182, %s183
    %p197 = scmp.eq.s32.totalorder %s19, 3
    %p198 = por %p196, %p197
    %p200 = scmp.ne.s32.totalorder %s183, %s199
    %p201 = scmp.eq.s32.totalorder %s19, 0
    %p202 = por %p200, %p201
    %s203 = ssub.s32 %s20, %s32
    %s204 = ssub.s32 %s21, %s28
    %s205 = sor.u32 %s203, %s204
    %p206 = scmp.eq.s32.totalorder %s205, 0
    %s208 = sadd.s32 %s207, 1
    %s209 = scalar_select %p206, %s207, %s208
    %p212 = pneg %p206
    %p213 = scmp.eq.s32.totalorder %s13, 3
    %p214 = por %p212, %p213
    %p215 = scmp.ne.s32.totalorder %s207, %s210
    %p216 = scmp.eq.s32.totalorder %s13, 0
    %p217 = por %p215, %p216
    %p218 = scmp.ne.s32.totalorder %s207, %s210
    %p219 = scmp.eq.s32.totalorder %s18, 3
    %p220 = por %p218, %p219
    %p221 = scmp.ne.s32.totalorder %s210, %s211
    %p222 = scmp.eq.s32.totalorder %s18, 0
    %p223 = por %p221, %p222
    %p224 = scmp.ne.s32.totalorder %s210, %s211
    %p225 = scmp.eq.s32.totalorder %s19, 3
    %p226 = por %p224, %p225
    %p228 = scmp.ne.s32.totalorder %s211, %s227
    %p229 = scmp.eq.s32.totalorder %s19, 0
    %p230 = por %p228, %p229
    %p231 = scmp.le.s32.totalorder 1, %s13
    %p232 = scmp.lt.s32.totalorder %s13, 5
    %p233 = pnand %p231, %p232
    %p234 = pneg %p233
    // Predicated region
    $region9: #{down_conv2d_forward.4} parent=5 // pred_check
      _
    $region10: #{down_conv2d_forward.4} parent=5 // pred_check_branch
      %236 = sbr.rel (%p233) target = $region12
    $region11: #{down_conv2d_forward.4} parent=5 // pred_region
      %s237 = ssub.s32 %s13, 1
      // Predicated region
      $region13: #{down_conv2d_forward.4} parent=11 // pred_check
        %p238 = pneg %p46
      $region14: #{down_conv2d_forward.4} parent=11 // pred_check_branch
        %240 = sbr.rel (%p238) target = $region16
      $region15: #{down_conv2d_forward.4} parent=11 // pred_region
        _
      $region16: #{down_conv2d_forward.4} parent=11 // pred_fallthru
        _
      // Predicated region
      $region17: #{down_conv2d_forward.4} parent=11 // pred_check
        %p241 = pneg %p167
      $region18: #{down_conv2d_forward.4} parent=11 // pred_check_branch
        %243 = sbr.rel (%p241) target = $region20
      $region19: #{down_conv2d_forward.4} parent=11 // pred_region
        _
      $region20: #{down_conv2d_forward.4} parent=11 // pred_fallthru
        _
    $region12: #{down_conv2d_forward.4} parent=5 // pred_fallthru
      _
    %p244 = scmp.lt.s32.totalorder %s13, 4
    // Predicated region
    $region21: #{down_conv2d_forward.4} parent=5 // pred_check
      %p245 = pneg %p244
    $region22: #{down_conv2d_forward.4} parent=5 // pred_check_branch
      %247 = sbr.rel (%p245) target = $region24
    $region23: #{down_conv2d_forward.4} parent=5 // pred_region
      // Predicated region
      $region25: #{down_conv2d_forward.4} parent=23 // pred_check
        %p248 = pneg %p68
      $region26: #{down_conv2d_forward.4} parent=23 // pred_check_branch
        %250 = sbr.rel (%p248) target = $region28
      $region27: #{down_conv2d_forward.4} parent=23 // pred_region
        %s251 = smul.u32 4, %s21
        %p252 = scmp.lt.s32.totalorder %s20, 1
        %s253 = scalar_select %p252, %s20, 1
        %p254 = scmp.lt.s32.totalorder %s251, 7
        %s255 = scalar_select %p254, %s251, 7
        %s256 = smul.addr %s253, 8
        %s257 = sadd.s32 %s255, %s256
        %s258 = smul.addr %s257, 8
        %s259 = scalar_lea.vmem %s1, %s258
        %s260 = smul.u32 4, %s21
      $region28: #{down_conv2d_forward.4} parent=23 // pred_fallthru
        _
      // Predicated region
      $region29: #{down_conv2d_forward.4} parent=23 // pred_check
        %p261 = pneg %p104
      $region30: #{down_conv2d_forward.4} parent=23 // pred_check_branch
        %263 = sbr.rel (%p261) target = $region32
      $region31: #{down_conv2d_forward.4} parent=23 // pred_region
        %s264 = smul.u32 %s21, 4
        %s265 = ssub.s32 %s264, 1
        %p266 = scmp.gt.s32.totalorder %s265, 0
        %s267 = scalar_select %p266, %s265, 0
        %p268 = scmp.lt.s32.totalorder %s20, 1
        %s269 = scalar_select %p268, %s20, 1
        %p270 = scmp.lt.s32.totalorder %s267, 7
        %s271 = scalar_select %p270, %s267, 7
        %s272 = smul.addr %s269, 8
        %s273 = sadd.s32 %s271, %s272
        %s274 = smul.addr %s273, 8
        %s275 = scalar_lea.vmem %s2, %s274
        %s276 = smul.u32 %s21, 4
        %s277 = ssub.s32 %s276, 1
        %p278 = scmp.gt.s32.totalorder %s277, 0
        %s279 = scalar_select %p278, %s277, 0
      $region32: #{down_conv2d_forward.4} parent=23 // pred_fallthru
        _
      // Predicated region
      $region33: #{down_conv2d_forward.4} parent=23 // pred_check
        %p280 = pneg %p140
      $region34: #{down_conv2d_forward.4} parent=23 // pred_check_branch
        %282 = sbr.rel (%p280) target = $region36
      $region35: #{down_conv2d_forward.4} parent=23 // pred_region
        %s283 = smul.u32 %s21, 4
        %s284 = sadd.s32 %s283, 4
        %p285 = scmp.lt.s32.totalorder %s284, 7
        %s286 = scalar_select %p285, %s284, 7
        %p287 = scmp.lt.s32.totalorder %s20, 1
        %s288 = scalar_select %p287, %s20, 1
        %p289 = scmp.lt.s32.totalorder %s286, 7
        %s290 = scalar_select %p289, %s286, 7
        %s291 = smul.addr %s288, 8
        %s292 = sadd.s32 %s290, %s291
        %s293 = smul.addr %s292, 8
        %s294 = scalar_lea.vmem %s3, %s293
        %s295 = smul.u32 %s21, 4
        %s296 = sadd.s32 %s295, 4
        %p297 = scmp.lt.s32.totalorder %s296, 7
        %s298 = scalar_select %p297, %s296, 7
      $region36: #{down_conv2d_forward.4} parent=23 // pred_fallthru
        _
    $region24: #{down_conv2d_forward.4} parent=5 // pred_fallthru
      _
    %p299 = scmp.le.s32.totalorder 1, %s13
    %p300 = scmp.lt.s32.totalorder %s13, 5
    %p301 = pnand %p299, %p300
    %p302 = pneg %p301
    // Predicated region
    $region37: #{down_conv2d_forward.4} parent=5 // pred_check
      _
    $region38: #{down_conv2d_forward.4} parent=5 // pred_check_branch
      %304 = sbr.rel (%p301) target = $region40
    $region39: #{down_conv2d_forward.4} parent=5 // pred_region
      %s305 = ssub.s32 %s13, 1
      %p306 = pneg %p46
      %p307 = pneg %p43
      %s308 = smul.u32 4, %s23
      %p309 = scmp.lt.s32.totalorder %s22, 1
      %s310 = scalar_select %p309, %s22, 1
      %p311 = scmp.lt.s32.totalorder %s308, 7
      %s312 = scalar_select %p311, %s308, 7
      %s313 = smul.addr %s310, 8
      %s314 = sadd.s32 %s312, %s313
      %s315 = smul.addr %s314, 8
      %s316 = scalar_lea.vmem %s1, %s315
      %p317 = pneg %p74
      %p318 = pneg %p71
      %s319 = smul.u32 %s23, 4
      %s320 = ssub.s32 %s319, 1
      %p321 = scmp.gt.s32.totalorder %s320, 0
      %s322 = scalar_select %p321, %s320, 0
      %p323 = scmp.lt.s32.totalorder %s22, 1
      %s324 = scalar_select %p323, %s22, 1
      %p325 = scmp.lt.s32.totalorder %s322, 7
      %s326 = scalar_select %p325, %s322, 7
      %s327 = smul.addr %s324, 8
      %s328 = sadd.s32 %s326, %s327
      %s329 = smul.addr %s328, 8
      %s330 = scalar_lea.vmem %s2, %s329
      %p331 = pneg %p110
      %p332 = pneg %p107
      %s333 = smul.u32 %s23, 4
      %s334 = sadd.s32 %s333, 4
      %p335 = scmp.lt.s32.totalorder %s334, 7
      %s336 = scalar_select %p335, %s334, 7
      %p337 = scmp.lt.s32.totalorder %s22, 1
      %s338 = scalar_select %p337, %s22, 1
      %p339 = scmp.lt.s32.totalorder %s336, 7
      %s340 = scalar_select %p339, %s336, 7
      %s341 = smul.addr %s338, 8
      %s342 = sadd.s32 %s340, %s341
      %s343 = smul.addr %s342, 8
      %s344 = scalar_lea.vmem %s3, %s343
      %p345 = pneg %p146
      %p346 = pneg %p143
      %p347 = pneg %p167
      %p348 = pneg %p164
      %p349 = pneg %p195
      %p350 = pneg %p192
      %s351 = smul.u32 4, %s23
      %p352 = scmp.lt.s32.totalorder %s22, 1
      %s353 = scalar_select %p352, %s22, 1
      %p354 = scmp.lt.s32.totalorder %s351, 7
      %s355 = scalar_select %p354, %s351, 7
      %s356 = smul.addr %s353, 8
      %s357 = sadd.s32 %s355, %s356
      %s358 = smul.addr %s357, 8
      %s359 = scalar_lea.vmem %s5, %s358
      %p360 = pneg %p223
      %p361 = pneg %p220
      %p362 = scmp.lt.s32.totalorder %s22, 1
      %s363 = scalar_select %p362, %s22, 1
      %p364 = scmp.lt.s32.totalorder %s23, 1
      %s365 = scalar_select %p364, %s23, 1
      %s366 = smul.addr %s363, 2
      %s367 = sadd.s32 %s365, %s366
      %s368 = smul.addr %s367, 2
      %s369 = scalar_lea.vmem %s6, %s368
      %s370 = smul.u32 4, %s23
      %p371 = scmp.lt.s32.totalorder %s22, 1
      %s372 = scalar_select %p371, %s22, 1
      %p373 = scmp.lt.s32.totalorder %s370, 7
      %s374 = scalar_select %p373, %s370, 7
      %s375 = smul.addr %s372, 8
      %s376 = sadd.s32 %s374, %s375
      %s377 = smul.addr %s376, 8
      %s378 = scalar_lea.vmem %s1, %s377
      %s379 = smul.u32 4, %s23
      %s380 = smul.u32 %s23, 4
      %s381 = ssub.s32 %s380, 1
      %p382 = scmp.gt.s32.totalorder %s381, 0
      %s383 = scalar_select %p382, %s381, 0
      %p384 = scmp.lt.s32.totalorder %s22, 1
      %s385 = scalar_select %p384, %s22, 1
      %p386 = scmp.lt.s32.totalorder %s383, 7
      %s387 = scalar_select %p386, %s383, 7
      %s388 = smul.addr %s385, 8
      %s389 = sadd.s32 %s387, %s388
      %s390 = smul.addr %s389, 8
      %s391 = scalar_lea.vmem %s2, %s390
      %s392 = smul.u32 %s23, 4
      %s393 = ssub.s32 %s392, 1
      %p394 = scmp.gt.s32.totalorder %s393, 0
      %s395 = scalar_select %p394, %s393, 0
      %s396 = smul.u32 %s23, 4
      %s397 = sadd.s32 %s396, 4
      %p398 = scmp.lt.s32.totalorder %s397, 7
      %s399 = scalar_select %p398, %s397, 7
      %p400 = scmp.lt.s32.totalorder %s22, 1
      %s401 = scalar_select %p400, %s22, 1
      %p402 = scmp.lt.s32.totalorder %s399, 7
      %s403 = scalar_select %p402, %s399, 7
      %s404 = smul.addr %s401, 8
      %s405 = sadd.s32 %s403, %s404
      %s406 = smul.addr %s405, 8
      %s407 = scalar_lea.vmem %s3, %s406
      %s408 = smul.u32 %s23, 4
      %s409 = sadd.s32 %s408, 4
      %p410 = scmp.lt.s32.totalorder %s409, 7
      %s411 = scalar_select %p410, %s409, 7
      %s412 = smul.u32 4, %s23
      %p413 = scmp.lt.s32.totalorder %s22, 1
      %s414 = scalar_select %p413, %s22, 1
      %p415 = scmp.lt.s32.totalorder %s412, 7
      %s416 = scalar_select %p415, %s412, 7
      %s417 = smul.addr %s414, 8
      %s418 = sadd.s32 %s416, %s417
      %s419 = smul.addr %s418, 8
      %s420 = scalar_lea.vmem %s5, %s419
      %s421 = smul.u32 4, %s23
      %p422 = scmp.lt.s32.totalorder %s22, 1
      %s423 = scalar_select %p422, %s22, 1
      %p424 = scmp.lt.s32.totalorder %s23, 1
      %s425 = scalar_select %p424, %s23, 1
      %s426 = smul.addr %s423, 2
      %s427 = sadd.s32 %s425, %s426
      %s428 = smul.addr %s427, 2
      %s429 = scalar_lea.vmem %s6, %s428
      %p430 = scmp.gt.s32.totalorder %s23, 0
      %s431 = scalar_select %p430, 1, 0
      %s432 = scvt.s32.f32 %s431
      %p433 = scmp.lt.s32.totalorder %s23, 1
      %s434 = scalar_select %p433, 1, 0
      %s435 = scvt.s32.f32 %s434
      %v436 = vld [vmem:[%s0] sm:$0x3]
      %v437 = vld [vmem:[%s378] sm:$0xff]
      %v438 = vld [vmem:[%s378 + $0x8] sm:$0xff]
      %v439 = vld [vmem:[%s378 + $0x10] sm:$0xff]
      %v440 = vld [vmem:[%s378 + $0x18] sm:$0xff]
      %v441 = vperm.slane %v436, 0
      %v442 = vmul.f32 %v437, %v441
      %v443 = vmul.f32 %v438, %v441
      %v444 = vmul.f32 %v439, %v441
      %v445 = vmul.f32 %v440, %v441
      %v446 = vperm.slane %v436, 1
      %v447 = vadd.f32 %v442, %v446
      %v448 = vadd.f32 %v443, %v446
      %v449 = vadd.f32 %v444, %v446
      %v450 = vadd.f32 %v445, %v446
      %v451 = vmax.f32 %v447, 0.0
      %v452 = vmax.f32 %v448, 0.0
      %v453 = vmax.f32 %v449, 0.0
      %v454 = vmax.f32 %v450, 0.0
      %v455 = vld [vmem:[%s391] sm:$0xff]
      %v456 = vmul.f32 %v455, %v441
      %v457 = vadd.f32 %v456, %v446
      %v458 = vmax.f32 %v457, 0.0
      %v459 = vstv %s432
      %v460 = vmul.f32 %v458, %v459
      %v461 = vld [vmem:[%s407] sm:$0xff]
      %v462 = vmul.f32 %v461, %v441
      %v463 = vadd.f32 %v462, %v446
      %v464 = vmax.f32 %v463, 0.0
      %v465 = vstv %s435
      %v466 = vmul.f32 %v464, %v465
      %vm467 = vcmask 64512
      %468 = vst.msk [vmem:[#allocation2] sm:$0xff] %vm467, 0.0
      %vm469 = vcmask 58368
      %470 = vst.msk [vmem:[#allocation2 + $0x8] sm:$0x3] %vm469, 0.0
      %471 = vst.msk [vmem:[#allocation2 + $0x10] sm:$0xff] %vm467, 0.0
      %472 = vst.msk [vmem:[#allocation2 + $0x18] sm:$0x3] %vm469, 0.0
      %473 = vst.msk [vmem:[#allocation2 + $0x20] sm:$0xff] %vm467, 0.0
      %474 = vst.msk [vmem:[#allocation2 + $0x28] sm:$0x3] %vm469, 0.0
      %475 = vst.msk [vmem:[#allocation2 + $0x30] sm:$0xff] %vm467, 0.0
      %476 = vst.msk [vmem:[#allocation2 + $0x38] sm:$0x3] %vm469, 0.0
      %477 = vst.msk [vmem:[#allocation2 + $0x40] sm:$0xff] %vm467, 0.0
      %478 = vst.msk [vmem:[#allocation2 + $0x48] sm:$0x3] %vm469, 0.0
      %479 = vst.msk [vmem:[#allocation2 + $0x50] sm:$0xff] %vm467, 0.0
      %480 = vst.msk [vmem:[#allocation2 + $0x58] sm:$0x3] %vm469, 0.0
      %481 = vst.msk [vmem:[#allocation2 + $0x1] sm:$0xff] %vm467, %v460
      %s482 = scalar_lea.vmem [#allocation2], 16
      %483 = vst.msk [vmem:[%s482 + $0x1] sm:$0xff] %vm467, %v451
      %484 = vst.msk [vmem:[%s482 + $0x11] sm:$0xff] %vm467, %v452
      %485 = vst.msk [vmem:[%s482 + $0x21] sm:$0xff] %vm467, %v453
      %486 = vst.msk [vmem:[%s482 + $0x31] sm:$0xff] %vm467, %v454
      %s487 = scalar_lea.vmem [#allocation2], 80
      %488 = vst.msk [vmem:[%s487 + $0x1] sm:$0xff] %vm467, %v466
      %v489 = vld [vmem:[#allocation2] sm:$0xff]
      %v490 = vld [vmem:[#allocation2 + $0x8] sm:$0x3]
      %v491 = vld [vmem:[#allocation2 + $0x10] sm:$0xff]
      %v492 = vld [vmem:[#allocation2 + $0x18] sm:$0x3]
      %v493 = vld [vmem:[#allocation2 + $0x20] sm:$0xff]
      %v494 = vld [vmem:[#allocation2 + $0x28] sm:$0x3]
      %v495 = vld [vmem:[#allocation2 + $0x30] sm:$0xff]
      %v496 = vld [vmem:[#allocation2 + $0x38] sm:$0x3]
      %v497 = vld [vmem:[#allocation2 + $0x40] sm:$0xff]
      %v498 = vld [vmem:[#allocation2 + $0x48] sm:$0x3]
      %v499 = vld [vmem:[#allocation2 + $0x50] sm:$0xff]
      %v500 = vld [vmem:[#allocation2 + $0x58] sm:$0x3]
      %v501 = vld [vmem:[%s4] sm:$0xff]
      %vm510 = vcmask 1046528
      %v511 = vrot.slane %v489, 1
      %v512 = vrot.slane %v490, 1
      %v513 = vsel %vm510, %v511, %v512
      %v514 = vrot.slane %v491, 1
      %v515 = vrot.slane %v492, 1
      %v516 = vsel %vm510, %v514, %v515
      %v517 = vrot.slane %v493, 1
      %v518 = vrot.slane %v494, 1
      %v519 = vsel %vm510, %v517, %v518
      %v520 = vrot.slane %v495, 1
      %v521 = vrot.slane %v496, 1
      %v522 = vsel %vm510, %v520, %v521
      %s523 = scalar_lea.vmem %s4, 8
      %v524 = vld [vmem:[%s523] sm:$0xff]
      %v525 = vsel %vm467, %v513, 0
      %v527 = vsel %vm467, %v516, 0
      %v529 = vsel %vm467, %v519, 0
      %v531 = vsel %vm467, %v522, 0
      %533 = vmatpush.msra.mxu0 0.0
      %534 = vmatpush.msra.mxu0 0.0
      %535 = vmatpush.msra.mxu0 0.0
      %536 = vmatpush.msra.mxu0 0.0
      %537 = vmatpush.msra.mxu0 0.0
      %538 = vmatpush.msra.mxu0 0.0
      %539 = vmatpush.msra.mxu0 0.0
      %540 = vmatpush.msra.mxu0 0.0
      %541 = vmatpush.msra.mxu0 0.0
      %542 = vmatpush.msra.mxu0 0.0
      %543 = vmatpush.msra.mxu0 0.0
      %544 = vmatpush.msra.mxu0 0.0
      %545 = vmatpush.msra.mxu0 0.0
      %546 = vmatpush.msra.mxu0 0.0
      %547 = vmatpush.msra.mxu0 0.0
      %548 = vmatpush.msra.mxu0 %v524
      %549 = vmatmul.f32.gmra.mxu0 %v525
      %v550 = vpop.f32.mrf.mxu0
      %v551 = vadd.f32 0.0, %v550
      %552 = vmatmul.f32.gmra.mxu0 %v527
      %v553 = vpop.f32.mrf.mxu0
      %v554 = vadd.f32 0.0, %v553
      %555 = vmatmul.f32.gmra.mxu0 %v529
      %v556 = vpop.f32.mrf.mxu0
      %v557 = vadd.f32 0.0, %v556
      %558 = vmatmul.f32.gmra.mxu0 %v531
      %v559 = vpop.f32.mrf.mxu0
      %v560 = vadd.f32 0.0, %v559
      %561 = vdwg.mxu0
      %v562 = vsel %vm467, %v489, 0
      %v564 = vsel %vm467, %v491, 0
      %v566 = vsel %vm467, %v493, 0
      %v568 = vsel %vm467, %v495, 0
      %570 = vmatpush.msra.mxu0 0.0
      %571 = vmatpush.msra.mxu0 0.0
      %572 = vmatpush.msra.mxu0 0.0
      %573 = vmatpush.msra.mxu0 0.0
      %574 = vmatpush.msra.mxu0 0.0
      %575 = vmatpush.msra.mxu0 0.0
      %576 = vmatpush.msra.mxu0 0.0
      %577 = vmatpush.msra.mxu0 0.0
      %578 = vmatpush.msra.mxu0 0.0
      %579 = vmatpush.msra.mxu0 0.0
      %580 = vmatpush.msra.mxu0 0.0
      %581 = vmatpush.msra.mxu0 0.0
      %582 = vmatpush.msra.mxu0 0.0
      %583 = vmatpush.msra.mxu0 0.0
      %584 = vmatpush.msra.mxu0 0.0
      %585 = vmatpush.msra.mxu0 %v501
      %586 = vmatmul.f32.gmra.mxu0 %v562
      %v587 = vpop.f32.mrf.mxu0
      %v588 = vadd.f32 %v551, %v587
      %589 = vmatmul.f32.gmra.mxu0 %v564
      %v590 = vpop.f32.mrf.mxu0
      %v591 = vadd.f32 %v554, %v590
      %592 = vmatmul.f32.gmra.mxu0 %v566
      %v593 = vpop.f32.mrf.mxu0
      %v594 = vadd.f32 %v557, %v593
      %595 = vmatmul.f32.gmra.mxu0 %v568
      %v596 = vpop.f32.mrf.mxu0
      %v597 = vadd.f32 %v560, %v596
      %598 = vdwg.mxu0
      %vm599 = vcmask 1045504
      %v600 = vrot.slane %v489, 2
      %v601 = vrot.slane %v490, 2
      %v602 = vsel %vm599, %v600, %v601
      %v603 = vrot.slane %v491, 2
      %v604 = vrot.slane %v492, 2
      %v605 = vsel %vm599, %v603, %v604
      %v606 = vrot.slane %v493, 2
      %v607 = vrot.slane %v494, 2
      %v608 = vsel %vm599, %v606, %v607
      %v609 = vrot.slane %v495, 2
      %v610 = vrot.slane %v496, 2
      %v611 = vsel %vm599, %v609, %v610
      %s612 = scalar_lea.vmem %s4, 16
      %v613 = vld [vmem:[%s612] sm:$0xff]
      %v614 = vsel %vm467, %v602, 0
      %v616 = vsel %vm467, %v605, 0
      %v618 = vsel %vm467, %v608, 0
      %v620 = vsel %vm467, %v611, 0
      %622 = vmatpush.msra.mxu0 0.0
      %623 = vmatpush.msra.mxu0 0.0
      %624 = vmatpush.msra.mxu0 0.0
      %625 = vmatpush.msra.mxu0 0.0
      %626 = vmatpush.msra.mxu0 0.0
      %627 = vmatpush.msra.mxu0 0.0
      %628 = vmatpush.msra.mxu0 0.0
      %629 = vmatpush.msra.mxu0 0.0
      %630 = vmatpush.msra.mxu0 0.0
      %631 = vmatpush.msra.mxu0 0.0
      %632 = vmatpush.msra.mxu0 0.0
      %633 = vmatpush.msra.mxu0 0.0
      %634 = vmatpush.msra.mxu0 0.0
      %635 = vmatpush.msra.mxu0 0.0
      %636 = vmatpush.msra.mxu0 0.0
      %637 = vmatpush.msra.mxu0 %v613
      %638 = vmatmul.f32.gmra.mxu0 %v614
      %v639 = vpop.f32.mrf.mxu0
      %v640 = vadd.f32 0.0, %v639
      %641 = vmatmul.f32.gmra.mxu0 %v616
      %v642 = vpop.f32.mrf.mxu0
      %v643 = vadd.f32 0.0, %v642
      %644 = vmatmul.f32.gmra.mxu0 %v618
      %v645 = vpop.f32.mrf.mxu0
      %v646 = vadd.f32 0.0, %v645
      %647 = vmatmul.f32.gmra.mxu0 %v620
      %v648 = vpop.f32.mrf.mxu0
      %v649 = vadd.f32 0.0, %v648
      %650 = vdwg.mxu0
      %v651 = vadd.f32 %v588, %v640
      %v652 = vadd.f32 %v591, %v643
      %v653 = vadd.f32 %v594, %v646
      %v654 = vadd.f32 %v597, %v649
      %s655 = scalar_lea.vmem %s4, 24
      %v656 = vld [vmem:[%s655] sm:$0xff]
      %v658 = vsel %vm467, %v497, 0
      %660 = vmatpush.msra.mxu0 0.0
      %661 = vmatpush.msra.mxu0 0.0
      %662 = vmatpush.msra.mxu0 0.0
      %663 = vmatpush.msra.mxu0 0.0
      %664 = vmatpush.msra.mxu0 0.0
      %665 = vmatpush.msra.mxu0 0.0
      %666 = vmatpush.msra.mxu0 0.0
      %667 = vmatpush.msra.mxu0 0.0
      %668 = vmatpush.msra.mxu0 0.0
      %669 = vmatpush.msra.mxu0 0.0
      %670 = vmatpush.msra.mxu0 0.0
      %671 = vmatpush.msra.mxu0 0.0
      %672 = vmatpush.msra.mxu0 0.0
      %673 = vmatpush.msra.mxu0 0.0
      %674 = vmatpush.msra.mxu0 0.0
      %675 = vmatpush.msra.mxu0 %v656
      %676 = vmatmul.f32.gmra.mxu0 %v564
      %v677 = vpop.f32.mrf.mxu0
      %v678 = vadd.f32 0.0, %v677
      %679 = vmatmul.f32.gmra.mxu0 %v566
      %v680 = vpop.f32.mrf.mxu0
      %v681 = vadd.f32 0.0, %v680
      %682 = vmatmul.f32.gmra.mxu0 %v568
      %v683 = vpop.f32.mrf.mxu0
      %v684 = vadd.f32 0.0, %v683
      %685 = vmatmul.f32.gmra.mxu0 %v658
      %v686 = vpop.f32.mrf.mxu0
      %v687 = vadd.f32 0.0, %v686
      %688 = vdwg.mxu0
      %v689 = vadd.f32 %v651, %v678
      %v690 = vadd.f32 %v652, %v681
      %v691 = vadd.f32 %v653, %v684
      %v692 = vadd.f32 %v654, %v687
      %v694 = vrot.slane %v497, 1
      %v695 = vrot.slane %v498, 1
      %v696 = vsel %vm510, %v694, %v695
      %s697 = scalar_lea.vmem %s4, 32
      %v698 = vld [vmem:[%s697] sm:$0xff]
      %v699 = vsel %vm467, %v696, 0
      %701 = vmatpush.msra.mxu0 0.0
      %702 = vmatpush.msra.mxu0 0.0
      %703 = vmatpush.msra.mxu0 0.0
      %704 = vmatpush.msra.mxu0 0.0
      %705 = vmatpush.msra.mxu0 0.0
      %706 = vmatpush.msra.mxu0 0.0
      %707 = vmatpush.msra.mxu0 0.0
      %708 = vmatpush.msra.mxu0 0.0
      %709 = vmatpush.msra.mxu0 0.0
      %710 = vmatpush.msra.mxu0 0.0
      %711 = vmatpush.msra.mxu0 0.0
      %712 = vmatpush.msra.mxu0 0.0
      %713 = vmatpush.msra.mxu0 0.0
      %714 = vmatpush.msra.mxu0 0.0
      %715 = vmatpush.msra.mxu0 0.0
      %716 = vmatpush.msra.mxu0 %v698
      %717 = vmatmul.f32.gmra.mxu0 %v527
      %v718 = vpop.f32.mrf.mxu0
      %v719 = vadd.f32 0.0, %v718
      %720 = vmatmul.f32.gmra.mxu0 %v529
      %v721 = vpop.f32.mrf.mxu0
      %v722 = vadd.f32 0.0, %v721
      %723 = vmatmul.f32.gmra.mxu0 %v531
      %v724 = vpop.f32.mrf.mxu0
      %v725 = vadd.f32 0.0, %v724
      %726 = vmatmul.f32.gmra.mxu0 %v699
      %v727 = vpop.f32.mrf.mxu0
      %v728 = vadd.f32 0.0, %v727
      %729 = vdwg.mxu0
      %v730 = vadd.f32 %v689, %v719
      %v731 = vadd.f32 %v690, %v722
      %v732 = vadd.f32 %v691, %v725
      %v733 = vadd.f32 %v692, %v728
      %v734 = vrot.slane %v497, 2
      %v735 = vrot.slane %v498, 2
      %v736 = vsel %vm599, %v734, %v735
      %s737 = scalar_lea.vmem %s4, 40
      %v738 = vld [vmem:[%s737] sm:$0xff]
      %v739 = vsel %vm467, %v736, 0
      %741 = vmatpush.msra.mxu0 0.0
      %742 = vmatpush.msra.mxu0 0.0
      %743 = vmatpush.msra.mxu0 0.0
      %744 = vmatpush.msra.mxu0 0.0
      %745 = vmatpush.msra.mxu0 0.0
      %746 = vmatpush.msra.mxu0 0.0
      %747 = vmatpush.msra.mxu0 0.0
      %748 = vmatpush.msra.mxu0 0.0
      %749 = vmatpush.msra.mxu0 0.0
      %750 = vmatpush.msra.mxu0 0.0
      %751 = vmatpush.msra.mxu0 0.0
      %752 = vmatpush.msra.mxu0 0.0
      %753 = vmatpush.msra.mxu0 0.0
      %754 = vmatpush.msra.mxu0 0.0
      %755 = vmatpush.msra.mxu0 0.0
      %756 = vmatpush.msra.mxu0 %v738
      %757 = vmatmul.f32.gmra.mxu0 %v616
      %v758 = vpop.f32.mrf.mxu0
      %v759 = vadd.f32 0.0, %v758
      %760 = vmatmul.f32.gmra.mxu0 %v618
      %v761 = vpop.f32.mrf.mxu0
      %v762 = vadd.f32 0.0, %v761
      %763 = vmatmul.f32.gmra.mxu0 %v620
      %v764 = vpop.f32.mrf.mxu0
      %v765 = vadd.f32 0.0, %v764
      %766 = vmatmul.f32.gmra.mxu0 %v739
      %v767 = vpop.f32.mrf.mxu0
      %v768 = vadd.f32 0.0, %v767
      %769 = vdwg.mxu0
      %v770 = vadd.f32 %v730, %v759
      %v771 = vadd.f32 %v731, %v762
      %v772 = vadd.f32 %v732, %v765
      %v773 = vadd.f32 %v733, %v768
      %s774 = scalar_lea.vmem %s4, 48
      %v775 = vld [vmem:[%s774] sm:$0xff]
      %v777 = vsel %vm467, %v499, 0
      %779 = vmatpush.msra.mxu0 0.0
      %780 = vmatpush.msra.mxu0 0.0
      %781 = vmatpush.msra.mxu0 0.0
      %782 = vmatpush.msra.mxu0 0.0
      %783 = vmatpush.msra.mxu0 0.0
      %784 = vmatpush.msra.mxu0 0.0
      %785 = vmatpush.msra.mxu0 0.0
      %786 = vmatpush.msra.mxu0 0.0
      %787 = vmatpush.msra.mxu0 0.0
      %788 = vmatpush.msra.mxu0 0.0
      %789 = vmatpush.msra.mxu0 0.0
      %790 = vmatpush.msra.mxu0 0.0
      %791 = vmatpush.msra.mxu0 0.0
      %792 = vmatpush.msra.mxu0 0.0
      %793 = vmatpush.msra.mxu0 0.0
      %794 = vmatpush.msra.mxu0 %v775
      %795 = vmatmul.f32.gmra.mxu0 %v566
      %v796 = vpop.f32.mrf.mxu0
      %v797 = vadd.f32 0.0, %v796
      %798 = vmatmul.f32.gmra.mxu0 %v568
      %v799 = vpop.f32.mrf.mxu0
      %v800 = vadd.f32 0.0, %v799
      %801 = vmatmul.f32.gmra.mxu0 %v658
      %v802 = vpop.f32.mrf.mxu0
      %v803 = vadd.f32 0.0, %v802
      %804 = vmatmul.f32.gmra.mxu0 %v777
      %v805 = vpop.f32.mrf.mxu0
      %v806 = vadd.f32 0.0, %v805
      %807 = vdwg.mxu0
      %v808 = vadd.f32 %v770, %v797
      %v809 = vadd.f32 %v771, %v800
      %v810 = vadd.f32 %v772, %v803
      %v811 = vadd.f32 %v773, %v806
      %v813 = vrot.slane %v499, 1
      %v814 = vrot.slane %v500, 1
      %v815 = vsel %vm510, %v813, %v814
      %s816 = scalar_lea.vmem %s4, 56
      %v817 = vld [vmem:[%s816] sm:$0xff]
      %v818 = vsel %vm467, %v815, 0
      %820 = vmatpush.msra.mxu0 0.0
      %821 = vmatpush.msra.mxu0 0.0
      %822 = vmatpush.msra.mxu0 0.0
      %823 = vmatpush.msra.mxu0 0.0
      %824 = vmatpush.msra.mxu0 0.0
      %825 = vmatpush.msra.mxu0 0.0
      %826 = vmatpush.msra.mxu0 0.0
      %827 = vmatpush.msra.mxu0 0.0
      %828 = vmatpush.msra.mxu0 0.0
      %829 = vmatpush.msra.mxu0 0.0
      %830 = vmatpush.msra.mxu0 0.0
      %831 = vmatpush.msra.mxu0 0.0
      %832 = vmatpush.msra.mxu0 0.0
      %833 = vmatpush.msra.mxu0 0.0
      %834 = vmatpush.msra.mxu0 0.0
      %835 = vmatpush.msra.mxu0 %v817
      %836 = vmatmul.f32.gmra.mxu0 %v529
      %v837 = vpop.f32.mrf.mxu0
      %v838 = vadd.f32 0.0, %v837
      %839 = vmatmul.f32.gmra.mxu0 %v531
      %v840 = vpop.f32.mrf.mxu0
      %v841 = vadd.f32 0.0, %v840
      %842 = vmatmul.f32.gmra.mxu0 %v699
      %v843 = vpop.f32.mrf.mxu0
      %v844 = vadd.f32 0.0, %v843
      %845 = vmatmul.f32.gmra.mxu0 %v818
      %v846 = vpop.f32.mrf.mxu0
      %v847 = vadd.f32 0.0, %v846
      %848 = vdwg.mxu0
      %v849 = vadd.f32 %v808, %v838
      %v850 = vadd.f32 %v809, %v841
      %v851 = vadd.f32 %v810, %v844
      %v852 = vadd.f32 %v811, %v847
      %v853 = vrot.slane %v499, 2
      %v854 = vrot.slane %v500, 2
      %v855 = vsel %vm599, %v853, %v854
      %s856 = scalar_lea.vmem %s4, 64
      %v857 = vld [vmem:[%s856] sm:$0xff]
      %v858 = vsel %vm467, %v855, 0
      %860 = vmatpush.msra.mxu0 0.0
      %861 = vmatpush.msra.mxu0 0.0
      %862 = vmatpush.msra.mxu0 0.0
      %863 = vmatpush.msra.mxu0 0.0
      %864 = vmatpush.msra.mxu0 0.0
      %865 = vmatpush.msra.mxu0 0.0
      %866 = vmatpush.msra.mxu0 0.0
      %867 = vmatpush.msra.mxu0 0.0
      %868 = vmatpush.msra.mxu0 0.0
      %869 = vmatpush.msra.mxu0 0.0
      %870 = vmatpush.msra.mxu0 0.0
      %871 = vmatpush.msra.mxu0 0.0
      %872 = vmatpush.msra.mxu0 0.0
      %873 = vmatpush.msra.mxu0 0.0
      %874 = vmatpush.msra.mxu0 0.0
      %875 = vmatpush.msra.mxu0 %v857
      %876 = vmatmul.f32.gmra.mxu0 %v618
      %v877 = vpop.f32.mrf.mxu0
      %v878 = vadd.f32 0.0, %v877
      %879 = vmatmul.f32.gmra.mxu0 %v620
      %v880 = vpop.f32.mrf.mxu0
      %v881 = vadd.f32 0.0, %v880
      %882 = vmatmul.f32.gmra.mxu0 %v739
      %v883 = vpop.f32.mrf.mxu0
      %v884 = vadd.f32 0.0, %v883
      %885 = vmatmul.f32.gmra.mxu0 %v858
      %v886 = vpop.f32.mrf.mxu0
      %v887 = vadd.f32 0.0, %v886
      %888 = vdwg.mxu0
      %v889 = vadd.f32 %v849, %v878
      %v890 = vadd.f32 %v850, %v881
      %v891 = vadd.f32 %v851, %v884
      %v892 = vadd.f32 %v852, %v887
      %893 = vst.msk [vmem:[%s420] sm:$0xff] %vm467, %v889
      %894 = vst.msk [vmem:[%s420 + $0x8] sm:$0xff] %vm467, %v890
      %895 = vst.msk [vmem:[%s420 + $0x10] sm:$0xff] %vm467, %v891
      %896 = vst.msk [vmem:[%s420 + $0x18] sm:$0xff] %vm467, %v892
      %v897 = vsel %vm467, %v889, 0.0
      %v898 = vsel %vm467, %v890, 0.0
      %v899 = vadd.f32 %v897, %v898
      %v900 = vsel %vm467, %v891, 0.0
      %v901 = vadd.f32 %v899, %v900
      %v902 = vsel %vm467, %v892, 0.0
      %v903 = vadd.f32 %v901, %v902
      %v904 = vrot.slane %v903, 4
      %v905 = vadd.f32 %v903, %v904
      %v906 = vrot.slane %v905, 2
      %v907 = vadd.f32 %v905, %v906
      %v908 = vrot.slane %v907, 1
      %v909 = vadd.f32 %v907, %v908
      %vm910 = vcmask 57344
      %911 = vst.msk [vmem:[%s429] sm:$0x1] %vm910, %v909
      %v912 = vmul.f32 %v889, %v889
      %v913 = vmul.f32 %v890, %v890
      %v914 = vmul.f32 %v891, %v891
      %v915 = vmul.f32 %v892, %v892
      %v916 = vsel %vm467, %v912, 0.0
      %v917 = vsel %vm467, %v913, 0.0
      %v918 = vadd.f32 %v916, %v917
      %v919 = vsel %vm467, %v914, 0.0
      %v920 = vadd.f32 %v918, %v919
      %v921 = vsel %vm467, %v915, 0.0
      %v922 = vadd.f32 %v920, %v921
      %v923 = vrot.slane %v922, 4
      %v924 = vadd.f32 %v922, %v923
      %v925 = vrot.slane %v924, 2
      %v926 = vadd.f32 %v924, %v925
      %v927 = vrot.slane %v926, 1
      %v928 = vadd.f32 %v926, %v927
      %929 = vst.msk [vmem:[%s429 + $0x1] sm:$0x1] %vm910, %v928
      %s930 = smul.u32 4, %s23
      %p931 = scmp.lt.s32.totalorder %s22, 1
      %s932 = scalar_select %p931, %s22, 1
      %p933 = scmp.lt.s32.totalorder %s930, 7
      %s934 = scalar_select %p933, %s930, 7
      %s935 = smul.addr %s932, 8
      %s936 = sadd.s32 %s934, %s935
      %s937 = smul.addr %s936, 8
      %s938 = scalar_lea.vmem %s5, %s937
      %p939 = scmp.lt.s32.totalorder %s22, 1
      %s940 = scalar_select %p939, %s22, 1
      %p941 = scmp.lt.s32.totalorder %s23, 1
      %s942 = scalar_select %p941, %s23, 1
      %s943 = smul.addr %s940, 2
      %s944 = sadd.s32 %s942, %s943
      %s945 = smul.addr %s944, 2
      %s946 = scalar_lea.vmem %s6, %s945
      // Predicated region
      $region41: #{down_conv2d_forward.4} parent=39 // pred_check
        %p947 = pneg %p192
      $region42: #{down_conv2d_forward.4} parent=39 // pred_check_branch
        %949 = sbr.rel (%p947) target = $region44
      $region43: #{down_conv2d_forward.4} parent=39 // pred_region
        %s950 = smul.u32 4, %s23
      $region44: #{down_conv2d_forward.4} parent=39 // pred_fallthru
        _
      // Predicated region
      $region45: #{down_conv2d_forward.4} parent=39 // pred_check
        %p951 = pneg %p220
      $region46: #{down_conv2d_forward.4} parent=39 // pred_check_branch
        %953 = sbr.rel (%p951) target = $region48
      $region47: #{down_conv2d_forward.4} parent=39 // pred_region
        _
      $region48: #{down_conv2d_forward.4} parent=39 // pred_fallthru
        _
    $region40: #{down_conv2d_forward.4} parent=5 // pred_fallthru
      _
    %p954 = scmp.le.s32.totalorder 2, %s13
    // Predicated region
    $region49: #{down_conv2d_forward.4} parent=5 // pred_check
      %p955 = pneg %p954
    $region50: #{down_conv2d_forward.4} parent=5 // pred_check_branch
      %957 = sbr.rel (%p955) target = $region52
    $region51: #{down_conv2d_forward.4} parent=5 // pred_region
      %s958 = ssub.s32 %s13, 2
      // Predicated region
      $region53: #{down_conv2d_forward.4} parent=51 // pred_check
        %p959 = pneg %p198
      $region54: #{down_conv2d_forward.4} parent=51 // pred_check_branch
        %961 = sbr.rel (%p959) target = $region56
      $region55: #{down_conv2d_forward.4} parent=51 // pred_region
        %s962 = smul.u32 4, %s25
        %p963 = scmp.lt.s32.totalorder %s24, 1
        %s964 = scalar_select %p963, %s24, 1
        %p965 = scmp.lt.s32.totalorder %s962, 7
        %s966 = scalar_select %p965, %s962, 7
        %s967 = smul.addr %s964, 8
        %s968 = sadd.s32 %s966, %s967
        %s969 = smul.addr %s968, 8
        %s970 = scalar_lea.vmem %s5, %s969
      $region56: #{down_conv2d_forward.4} parent=51 // pred_fallthru
        _
      // Predicated region
      $region57: #{down_conv2d_forward.4} parent=51 // pred_check
        %p971 = pneg %p226
      $region58: #{down_conv2d_forward.4} parent=51 // pred_check_branch
        %973 = sbr.rel (%p971) target = $region60
      $region59: #{down_conv2d_forward.4} parent=51 // pred_region
        %p974 = scmp.lt.s32.totalorder %s24, 1
        %s975 = scalar_select %p974, %s24, 1
        %p976 = scmp.lt.s32.totalorder %s25, 1
        %s977 = scalar_select %p976, %s25, 1
        %s978 = smul.addr %s975, 2
        %s979 = sadd.s32 %s977, %s978
        %s980 = smul.addr %s979, 2
        %s981 = scalar_lea.vmem %s6, %s980
      $region60: #{down_conv2d_forward.4} parent=51 // pred_fallthru
        _
    $region52: #{down_conv2d_forward.4} parent=5 // pred_fallthru
      _
  $region6: #{down_conv2d_forward.4} parent=0 // loop_footer
    %s17 = sadd.s32 1, %s13
  $region7: #{down_conv2d_forward.4} parent=0 // loop_footer_branch
    %12 = sbr.rel target = $region3
  $region8: #{down_conv2d_forward.4} parent=0 // loop_exit
    _

// kernel: down_conv2d_forward.3
$region0: #{down_conv2d_forward.3}
  #allocation0 [shape = 'u32[]', space=smem, size = 0x4, offset = 0x4, fixed_abs, tag = 'smem constant byte address 0x4 - core index']
  #allocation1 [shape = 'u32[72,128]{1,0:T(1,128)}', space=vmem, size = 0x9000, scoped, tag = 'internal scratch']
  #allocation2 [shape = 'f32[6,10,4]{2,1,0:T(8,128)}', space=vmem, size = 0xc000, scoped, tag = 'scratch operand']
  %s0 = inlined_call_operand.vmem [shape: f32[2,8,2,8,8], index: 0, kind: input, shape index: {}, may-alias: {0,1,2}]
  %s1 = inlined_call_operand.vmem [shape: f32[2,8,2,8,8], index: 1, kind: input, shape index: {}, may-alias: {0,1,2}]
  %s2 = inlined_call_operand.vmem [shape: f32[2,8,2,8,8], index: 2, kind: input, shape index: {}, may-alias: {0,1,2}]
  %s3 = inlined_call_operand.vmem [shape: f32[9,4,8], index: 3, kind: input, shape index: {}]
  %s4 = inlined_call_operand.vmem [shape: f32[2,64,8], index: 4, kind: output, shape index: {0}]
  %s5 = inlined_call_operand.vmem [shape: f32[2,2,2,8], index: 5, kind: output, shape index: {1}]
  %6 = xla_tuple %s4, %s5
  %s7 = sld [smem:[#allocation0]]
  $region57: #{down_conv2d_forward.3} parent=0
    _
  %s9 = ssub.s32 1, %s7
  %s10 = scalar_select 0, %s9, %s7
  loop: start=0, step=1, limit=6
  $region2: #{down_conv2d_forward.3} parent=0 // loop_pre_header
    _
  $region3: #{down_conv2d_forward.3} parent=0 // loop_header
    %s12 = sphi 0, %s16
    %p13 = scmp.ge.s32.totalorder %s12, 6
    %s19 = sphi 0, %s31
    %s20 = sphi 0, %s27
    %s21 = sphi 0, %s19
    %s22 = sphi 0, %s20
    %s23 = sphi 0, %s21
    %s24 = sphi 0, %s22
    %s36 = sphi 0, %s38
    %s39 = sphi 0, %s36
    %s40 = sphi 0, %s39
    %s56 = sphi 0, %s40
    %s72 = sphi 0, %s74
    %s75 = sphi 0, %s72
    %s76 = sphi 0, %s75
    %s92 = sphi 0, %s76
    %s108 = sphi 0, %s110
    %s111 = sphi 0, %s108
    %s112 = sphi 0, %s111
    %s128 = sphi 0, %s112
    %s132 = sphi 0, %s132
    %s134 = sphi 0, %s132
    %s135 = sphi 0, %s134
    %s149 = sphi 0, %s135
    %s157 = sphi 0, %s159
    %s160 = sphi 0, %s157
    %s161 = sphi 0, %s160
    %s177 = sphi 0, %s161
    %s185 = sphi 0, %s187
    %s188 = sphi 0, %s185
    %s189 = sphi 0, %s188
    %s205 = sphi 0, %s189
  $region4: #{down_conv2d_forward.3} parent=0 // loop_header_branch
    %15 = sbr.rel (%p13) target = $region8
  $region5: #{down_conv2d_forward.3} parent=0 // loop_body
    %s17 = ssub.s32 %s12, 1
    %s18 = ssub.s32 %s12, 2
    %s25 = sadd.s32 1, %s20
    %p26 = scmp.ge.s32.totalorder %s25, 2
    %s27 = scalar_select %p26, 0, %s25
    %s28 = sadd.s32 1, %s19
    %s29 = scalar_select %p26, %s28, %s19
    %p30 = scmp.ge.s32.totalorder %s29, 2
    %s31 = scalar_select %p30, 0, %s29
    %s32 = ssub.s32 %s19, %s31
    %s33 = ssub.s32 %s20, %s27
    %s34 = sor.u32 %s32, %s33
    %p35 = scmp.eq.s32.totalorder %s34, 0
    %s37 = sadd.s32 %s36, 1
    %s38 = scalar_select %p35, %s36, %s37
    %p41 = pneg %p35
    %p42 = scmp.eq.s32.totalorder %s12, 3
    %p43 = por %p41, %p42
    %p44 = scmp.ne.s32.totalorder %s36, %s39
    %p45 = scmp.eq.s32.totalorder %s12, 0
    %p46 = por %p44, %p45
    %p47 = scmp.ne.s32.totalorder %s36, %s39
    %p48 = scmp.eq.s32.totalorder %s17, 3
    %p49 = por %p47, %p48
    %p50 = scmp.ne.s32.totalorder %s39, %s40
    %p51 = scmp.eq.s32.totalorder %s17, 0
    %p52 = por %p50, %p51
    %p53 = scmp.ne.s32.totalorder %s39, %s40
    %p54 = scmp.eq.s32.totalorder %s18, 3
    %p55 = por %p53, %p54
    %p57 = scmp.ne.s32.totalorder %s40, %s56
    %p58 = scmp.eq.s32.totalorder %s18, 0
    %p59 = por %p57, %p58
    %s60 = smul.u32 %s20, 4
    %s61 = ssub.s32 %s60, 1
    %p62 = scmp.gt.s32.totalorder %s61, 0
    %s63 = scalar_select %p62, %s61, 0
    %s64 = smul.u32 %s27, 4
    %s65 = ssub.s32 %s64, 1
    %p66 = scmp.gt.s32.totalorder %s65, 0
    %s67 = scalar_select %p66, %s65, 0
    %s68 = ssub.s32 %s19, %s31
    %s69 = ssub.s32 %s63, %s67
    %s70 = sor.u32 %s68, %s69
    %p71 = scmp.eq.s32.totalorder %s70, 0
    %s73 = sadd.s32 %s72, 1
    %s74 = scalar_select %p71, %s72, %s73
    %p77 = pneg %p71
    %p78 = scmp.eq.s32.totalorder %s12, 3
    %p79 = por %p77, %p78
    %p80 = scmp.ne.s32.totalorder %s72, %s75
    %p81 = scmp.eq.s32.totalorder %s12, 0
    %p82 = por %p80, %p81
    %p83 = scmp.ne.s32.totalorder %s72, %s75
    %p84 = scmp.eq.s32.totalorder %s17, 3
    %p85 = por %p83, %p84
    %p86 = scmp.ne.s32.totalorder %s75, %s76
    %p87 = scmp.eq.s32.totalorder %s17, 0
    %p88 = por %p86, %p87
    %p89 = scmp.ne.s32.totalorder %s75, %s76
    %p90 = scmp.eq.s32.totalorder %s18, 3
    %p91 = por %p89, %p90
    %p93 = scmp.ne.s32.totalorder %s76, %s92
    %p94 = scmp.eq.s32.totalorder %s18, 0
    %p95 = por %p93, %p94
    %s96 = smul.u32 %s20, 4
    %s97 = sadd.s32 %s96, 4
    %p98 = scmp.lt.s32.totalorder %s97, 7
    %s99 = scalar_select %p98, %s97, 7
    %s100 = smul.u32 %s27, 4
    %s101 = sadd.s32 %s100, 4
    %p102 = scmp.lt.s32.totalorder %s101, 7
    %s103 = scalar_select %p102, %s101, 7
    %s104 = ssub.s32 %s19, %s31
    %s105 = ssub.s32 %s99, %s103
    %s106 = sor.u32 %s104, %s105
    %p107 = scmp.eq.s32.totalorder %s106, 0
    %s109 = sadd.s32 %s108, 1
    %s110 = scalar_select %p107, %s108, %s109
    %p113 = pneg %p107
    %p114 = scmp.eq.s32.totalorder %s12, 3
    %p115 = por %p113, %p114
    %p116 = scmp.ne.s32.totalorder %s108, %s111
    %p117 = scmp.eq.s32.totalorder %s12, 0
    %p118 = por %p116, %p117
    %p119 = scmp.ne.s32.totalorder %s108, %s111
    %p120 = scmp.eq.s32.totalorder %s17, 3
    %p121 = por %p119, %p120
    %p122 = scmp.ne.s32.totalorder %s111, %s112
    %p123 = scmp.eq.s32.totalorder %s17, 0
    %p124 = por %p122, %p123
    %p125 = scmp.ne.s32.totalorder %s111, %s112
    %p126 = scmp.eq.s32.totalorder %s18, 3
    %p127 = por %p125, %p126
    %p129 = scmp.ne.s32.totalorder %s112, %s128
    %p130 = scmp.eq.s32.totalorder %s18, 0
    %p131 = por %p129, %p130
    %s133 = sadd.s32 %s132, 1
    %p136 = scmp.eq.s32.totalorder %s12, 3
    %p137 = scmp.ne.s32.totalorder %s132, %s134
    %p138 = scmp.eq.s32.totalorder %s12, 0
    %p139 = por %p137, %p138
    %p140 = scmp.ne.s32.totalorder %s132, %s134
    %p141 = scmp.eq.s32.totalorder %s17, 3
    %p142 = por %p140, %p141
    %p143 = scmp.ne.s32.totalorder %s134, %s135
    %p144 = scmp.eq.s32.totalorder %s17, 0
    %p145 = por %p143, %p144
    %p146 = scmp.ne.s32.totalorder %s134, %s135
    %p147 = scmp.eq.s32.totalorder %s18, 3
    %p148 = por %p146, %p147
    %p150 = scmp.ne.s32.totalorder %s135, %s149
    %p151 = scmp.eq.s32.totalorder %s18, 0
    %p152 = por %p150, %p151
    %s153 = ssub.s32 %s19, %s31
    %s154 = ssub.s32 %s20, %s27
    %s155 = sor.u32 %s153, %s154
    %p156 = scmp.eq.s32.totalorder %s155, 0
    %s158 = sadd.s32 %s157, 1
    %s159 = scalar_select %p156, %s157, %s158
    %p162 = pneg %p156
    %p163 = scmp.eq.s32.totalorder %s12, 3
    %p164 = por %p162, %p163
    %p165 = scmp.ne.s32.totalorder %s157, %s160
    %p166 = scmp.eq.s32.totalorder %s12, 0
    %p167 = por %p165, %p166
    %p168 = scmp.ne.s32.totalorder %s157, %s160
    %p169 = scmp.eq.s32.totalorder %s17, 3
    %p170 = por %p168, %p169
    %p171 = scmp.ne.s32.totalorder %s160, %s161
    %p172 = scmp.eq.s32.totalorder %s17, 0
    %p173 = por %p171, %p172
    %p174 = scmp.ne.s32.totalorder %s160, %s161
    %p175 = scmp.eq.s32.totalorder %s18, 3
    %p176 = por %p174, %p175
    %p178 = scmp.ne.s32.totalorder %s161, %s177
    %p179 = scmp.eq.s32.totalorder %s18, 0
    %p180 = por %p178, %p179
    %s181 = ssub.s32 %s19, %s31
    %s182 = ssub.s32 %s20, %s27
    %s183 = sor.u32 %s181, %s182
    %p184 = scmp.eq.s32.totalorder %s183, 0
    %s186 = sadd.s32 %s185, 1
    %s187 = scalar_select %p184, %s185, %s186
    %p190 = pneg %p184
    %p191 = scmp.eq.s32.totalorder %s12, 3
    %p192 = por %p190, %p191
    %p193 = scmp.ne.s32.totalorder %s185, %s188
    %p194 = scmp.eq.s32.totalorder %s12, 0
    %p195 = por %p193, %p194
    %p196 = scmp.ne.s32.totalorder %s185, %s188
    %p197 = scmp.eq.s32.totalorder %s17, 3
    %p198 = por %p196, %p197
    %p199 = scmp.ne.s32.totalorder %s188, %s189
    %p200 = scmp.eq.s32.totalorder %s17, 0
    %p201 = por %p199, %p200
    %p202 = scmp.ne.s32.totalorder %s188, %s189
    %p203 = scmp.eq.s32.totalorder %s18, 3
    %p204 = por %p202, %p203
    %p206 = scmp.ne.s32.totalorder %s189, %s205
    %p207 = scmp.eq.s32.totalorder %s18, 0
    %p208 = por %p206, %p207
    %p209 = scmp.le.s32.totalorder 1, %s12
    %p210 = scmp.lt.s32.totalorder %s12, 5
    %p211 = pnand %p209, %p210
    %p212 = pneg %p211
    // Predicated region
    $region9: #{down_conv2d_forward.3} parent=5 // pred_check
      _
    $region10: #{down_conv2d_forward.3} parent=5 // pred_check_branch
      %214 = sbr.rel (%p211) target = $region12
    $region11: #{down_conv2d_forward.3} parent=5 // pred_region
      %s215 = ssub.s32 %s12, 1
      // Predicated region
      $region13: #{down_conv2d_forward.3} parent=11 // pred_check
        %p216 = pneg %p145
      $region14: #{down_conv2d_forward.3} parent=11 // pred_check_branch
        %218 = sbr.rel (%p216) target = $region16
      $region15: #{down_conv2d_forward.3} parent=11 // pred_region
        _
      $region16: #{down_conv2d_forward.3} parent=11 // pred_fallthru
        _
    $region12: #{down_conv2d_forward.3} parent=5 // pred_fallthru
      _
    %p219 = scmp.lt.s32.totalorder %s12, 4
    // Predicated region
    $region17: #{down_conv2d_forward.3} parent=5 // pred_check
      %p220 = pneg %p219
    $region18: #{down_conv2d_forward.3} parent=5 // pred_check_branch
      %222 = sbr.rel (%p220) target = $region20
    $region19: #{down_conv2d_forward.3} parent=5 // pred_region
      // Predicated region
      $region21: #{down_conv2d_forward.3} parent=19 // pred_check
        %p223 = pneg %p46
      $region22: #{down_conv2d_forward.3} parent=19 // pred_check_branch
        %225 = sbr.rel (%p223) target = $region24
      $region23: #{down_conv2d_forward.3} parent=19 // pred_region
        %s226 = smul.u32 4, %s20
        %p227 = scmp.lt.s32.totalorder %s19, 1
        %s228 = scalar_select %p227, %s19, 1
        %p229 = scmp.lt.s32.totalorder %s226, 7
        %s230 = scalar_select %p229, %s226, 7
        %s231 = smul.addr %s230, 2
        %s232 = smul.addr %s228, 16
        %s233 = sadd.s32 %s231, %s232
        %s234 = smul.addr %s233, 8
        %s235 = scalar_lea.vmem %s0, %s234
        %s236 = smul.u32 4, %s20
      $region24: #{down_conv2d_forward.3} parent=19 // pred_fallthru
        _
      // Predicated region
      $region25: #{down_conv2d_forward.3} parent=19 // pred_check
        %p237 = pneg %p82
      $region26: #{down_conv2d_forward.3} parent=19 // pred_check_branch
        %239 = sbr.rel (%p237) target = $region28
      $region27: #{down_conv2d_forward.3} parent=19 // pred_region
        %s240 = smul.u32 %s20, 4
        %s241 = ssub.s32 %s240, 1
        %p242 = scmp.gt.s32.totalorder %s241, 0
        %s243 = scalar_select %p242, %s241, 0
        %p244 = scmp.lt.s32.totalorder %s19, 1
        %s245 = scalar_select %p244, %s19, 1
        %p246 = scmp.lt.s32.totalorder %s243, 7
        %s247 = scalar_select %p246, %s243, 7
        %s248 = smul.addr %s247, 2
        %s249 = smul.addr %s245, 16
        %s250 = sadd.s32 %s248, %s249
        %s251 = smul.addr %s250, 8
        %s252 = scalar_lea.vmem %s1, %s251
        %s253 = smul.u32 %s20, 4
        %s254 = ssub.s32 %s253, 1
        %p255 = scmp.gt.s32.totalorder %s254, 0
        %s256 = scalar_select %p255, %s254, 0
      $region28: #{down_conv2d_forward.3} parent=19 // pred_fallthru
        _
      // Predicated region
      $region29: #{down_conv2d_forward.3} parent=19 // pred_check
        %p257 = pneg %p118
      $region30: #{down_conv2d_forward.3} parent=19 // pred_check_branch
        %259 = sbr.rel (%p257) target = $region32
      $region31: #{down_conv2d_forward.3} parent=19 // pred_region
        %s260 = smul.u32 %s20, 4
        %s261 = sadd.s32 %s260, 4
        %p262 = scmp.lt.s32.totalorder %s261, 7
        %s263 = scalar_select %p262, %s261, 7
        %p264 = scmp.lt.s32.totalorder %s19, 1
        %s265 = scalar_select %p264, %s19, 1
        %p266 = scmp.lt.s32.totalorder %s263, 7
        %s267 = scalar_select %p266, %s263, 7
        %s268 = smul.addr %s267, 2
        %s269 = smul.addr %s265, 16
        %s270 = sadd.s32 %s268, %s269
        %s271 = smul.addr %s270, 8
        %s272 = scalar_lea.vmem %s2, %s271
        %s273 = smul.u32 %s20, 4
        %s274 = sadd.s32 %s273, 4
        %p275 = scmp.lt.s32.totalorder %s274, 7
        %s276 = scalar_select %p275, %s274, 7
      $region32: #{down_conv2d_forward.3} parent=19 // pred_fallthru
        _
    $region20: #{down_conv2d_forward.3} parent=5 // pred_fallthru
      _
    %p277 = scmp.le.s32.totalorder 1, %s12
    %p278 = scmp.lt.s32.totalorder %s12, 5
    %p279 = pnand %p277, %p278
    %p280 = pneg %p279
    // Predicated region
    $region33: #{down_conv2d_forward.3} parent=5 // pred_check
      _
    $region34: #{down_conv2d_forward.3} parent=5 // pred_check_branch
      %282 = sbr.rel (%p279) target = $region36
    $region35: #{down_conv2d_forward.3} parent=5 // pred_region
      %s283 = ssub.s32 %s12, 1
      %s284 = smul.u32 4, %s22
      %p285 = scmp.lt.s32.totalorder %s21, 1
      %s286 = scalar_select %p285, %s21, 1
      %p287 = scmp.lt.s32.totalorder %s284, 7
      %s288 = scalar_select %p287, %s284, 7
      %s289 = smul.addr %s288, 2
      %s290 = smul.addr %s286, 16
      %s291 = sadd.s32 %s289, %s290
      %s292 = smul.addr %s291, 8
      %s293 = scalar_lea.vmem %s0, %s292
      %p294 = pneg %p52
      %p295 = pneg %p49
      %s296 = smul.u32 %s22, 4
      %s297 = ssub.s32 %s296, 1
      %p298 = scmp.gt.s32.totalorder %s297, 0
      %s299 = scalar_select %p298, %s297, 0
      %p300 = scmp.lt.s32.totalorder %s21, 1
      %s301 = scalar_select %p300, %s21, 1
      %p302 = scmp.lt.s32.totalorder %s299, 7
      %s303 = scalar_select %p302, %s299, 7
      %s304 = smul.addr %s303, 2
      %s305 = smul.addr %s301, 16
      %s306 = sadd.s32 %s304, %s305
      %s307 = smul.addr %s306, 8
      %s308 = scalar_lea.vmem %s1, %s307
      %p309 = pneg %p88
      %p310 = pneg %p85
      %s311 = smul.u32 %s22, 4
      %s312 = sadd.s32 %s311, 4
      %p313 = scmp.lt.s32.totalorder %s312, 7
      %s314 = scalar_select %p313, %s312, 7
      %p315 = scmp.lt.s32.totalorder %s21, 1
      %s316 = scalar_select %p315, %s21, 1
      %p317 = scmp.lt.s32.totalorder %s314, 7
      %s318 = scalar_select %p317, %s314, 7
      %s319 = smul.addr %s318, 2
      %s320 = smul.addr %s316, 16
      %s321 = sadd.s32 %s319, %s320
      %s322 = smul.addr %s321, 8
      %s323 = scalar_lea.vmem %s2, %s322
      %p324 = pneg %p124
      %p325 = pneg %p121
      %p326 = pneg %p145
      %p327 = pneg %p142
      %p328 = pneg %p173
      %p329 = pneg %p170
      %s330 = smul.u32 4, %s22
      %p331 = scmp.lt.s32.totalorder %s21, 1
      %s332 = scalar_select %p331, %s21, 1
      %p333 = scmp.lt.s32.totalorder %s330, 7
      %s334 = scalar_select %p333, %s330, 7
      %s335 = smul.addr %s332, 8
      %s336 = sadd.s32 %s334, %s335
      %s337 = smul.addr %s336, 8
      %s338 = scalar_lea.vmem %s4, %s337
      %p339 = pneg %p201
      %p340 = pneg %p198
      %p341 = scmp.lt.s32.totalorder %s21, 1
      %s342 = scalar_select %p341, %s21, 1
      %p343 = scmp.lt.s32.totalorder %s22, 1
      %s344 = scalar_select %p343, %s22, 1
      %s345 = smul.addr %s342, 2
      %s346 = sadd.s32 %s344, %s345
      %s347 = smul.addr %s346, 2
      %s348 = scalar_lea.vmem %s5, %s347
      %s349 = smul.u32 4, %s22
      %p350 = scmp.lt.s32.totalorder %s21, 1
      %s351 = scalar_select %p350, %s21, 1
      %p352 = scmp.lt.s32.totalorder %s349, 7
      %s353 = scalar_select %p352, %s349, 7
      %s354 = smul.addr %s353, 2
      %s355 = smul.addr %s351, 16
      %s356 = sadd.s32 %s354, %s355
      %s357 = smul.addr %s356, 8
      %s358 = scalar_lea.vmem %s0, %s357
      %s359 = smul.u32 4, %s22
      %s360 = smul.u32 %s22, 4
      %s361 = ssub.s32 %s360, 1
      %p362 = scmp.gt.s32.totalorder %s361, 0
      %s363 = scalar_select %p362, %s361, 0
      %p364 = scmp.lt.s32.totalorder %s21, 1
      %s365 = scalar_select %p364, %s21, 1
      %p366 = scmp.lt.s32.totalorder %s363, 7
      %s367 = scalar_select %p366, %s363, 7
      %s368 = smul.addr %s367, 2
      %s369 = smul.addr %s365, 16
      %s370 = sadd.s32 %s368, %s369
      %s371 = smul.addr %s370, 8
      %s372 = scalar_lea.vmem %s1, %s371
      %s373 = smul.u32 %s22, 4
      %s374 = ssub.s32 %s373, 1
      %p375 = scmp.gt.s32.totalorder %s374, 0
      %s376 = scalar_select %p375, %s374, 0
      %s377 = smul.u32 %s22, 4
      %s378 = sadd.s32 %s377, 4
      %p379 = scmp.lt.s32.totalorder %s378, 7
      %s380 = scalar_select %p379, %s378, 7
      %p381 = scmp.lt.s32.totalorder %s21, 1
      %s382 = scalar_select %p381, %s21, 1
      %p383 = scmp.lt.s32.totalorder %s380, 7
      %s384 = scalar_select %p383, %s380, 7
      %s385 = smul.addr %s384, 2
      %s386 = smul.addr %s382, 16
      %s387 = sadd.s32 %s385, %s386
      %s388 = smul.addr %s387, 8
      %s389 = scalar_lea.vmem %s2, %s388
      %s390 = smul.u32 %s22, 4
      %s391 = sadd.s32 %s390, 4
      %p392 = scmp.lt.s32.totalorder %s391, 7
      %s393 = scalar_select %p392, %s391, 7
      %s394 = smul.u32 4, %s22
      %p395 = scmp.lt.s32.totalorder %s21, 1
      %s396 = scalar_select %p395, %s21, 1
      %p397 = scmp.lt.s32.totalorder %s394, 7
      %s398 = scalar_select %p397, %s394, 7
      %s399 = smul.addr %s396, 8
      %s400 = sadd.s32 %s398, %s399
      %s401 = smul.addr %s400, 8
      %s402 = scalar_lea.vmem %s4, %s401
      %s403 = smul.u32 4, %s22
      %p404 = scmp.lt.s32.totalorder %s21, 1
      %s405 = scalar_select %p404, %s21, 1
      %p406 = scmp.lt.s32.totalorder %s22, 1
      %s407 = scalar_select %p406, %s22, 1
      %s408 = smul.addr %s405, 2
      %s409 = sadd.s32 %s407, %s408
      %s410 = smul.addr %s409, 2
      %s411 = scalar_lea.vmem %s5, %s410
      %p412 = scmp.gt.s32.totalorder %s22, 0
      %s413 = scalar_select %p412, 1, 0
      %s414 = scvt.s32.f32 %s413
      %p415 = scmp.lt.s32.totalorder %s22, 1
      %s416 = scalar_select %p415, 1, 0
      %s417 = scvt.s32.f32 %s416
      %v418 = vld [vmem:[%s358] sm:$0xff]
      %v419 = vld [vmem:[%s358 + $0x8] sm:$0xff]
      %v420 = vld [vmem:[%s358 + $0x10] sm:$0xff]
      %v421 = vld [vmem:[%s358 + $0x18] sm:$0xff]
      %v422 = vld [vmem:[%s358 + $0x20] sm:$0xff]
      %v423 = vld [vmem:[%s358 + $0x28] sm:$0xff]
      %v424 = vld [vmem:[%s358 + $0x30] sm:$0xff]
      %v425 = vld [vmem:[%s358 + $0x38] sm:$0xff]
      %v426 = vmax.f32 %v418, %v419
      %v427 = vmax.f32 %v420, %v421
      %v428 = vmax.f32 %v422, %v423
      %v429 = vmax.f32 %v424, %v425
      %434 = vrot.lane.b32.xlu0 %v426, 124
      %v435 = vpop.permute.xlu0 %434
      %436 = vrot.lane.b32.xlu0 %v427, 124
      %v437 = vpop.permute.xlu0 %436
      %438 = vrot.lane.b32.xlu0 %v428, 124
      %v439 = vpop.permute.xlu0 %438
      %440 = vrot.lane.b32.xlu0 %v429, 124
      %v441 = vpop.permute.xlu0 %440
      %v446 = vmax.f32 %v426, %v435
      %v447 = vmax.f32 %v427, %v437
      %v448 = vmax.f32 %v428, %v439
      %v449 = vmax.f32 %v429, %v441
      %v450 = vld [vmem:[%s372] sm:$0xff]
      %v451 = vld [vmem:[%s372 + $0x8] sm:$0xff]
      %v452 = vmax.f32 %v450, %v451
      %454 = vrot.lane.b32.xlu0 %v452, 124
      %v455 = vpop.permute.xlu0 %454
      %v457 = vmax.f32 %v452, %v455
      %v458 = vstv %s414
      %v459 = vmul.f32 %v457, %v458
      %v460 = vld [vmem:[%s389] sm:$0xff]
      %v461 = vld [vmem:[%s389 + $0x8] sm:$0xff]
      %v462 = vmax.f32 %v460, %v461
      %464 = vrot.lane.b32.xlu0 %v462, 124
      %v465 = vpop.permute.xlu0 %464
      %v467 = vmax.f32 %v462, %v465
      %v468 = vstv %s417
      %v469 = vmul.f32 %v467, %v468
      %vm470 = vcmask 31744
      %471 = vst.msk [vmem:[#allocation2] sm:$0xff] %vm470, 0.0
      %vm472 = vcmask 25600
      %473 = vst.msk [vmem:[#allocation2 + $0x8] sm:$0x3] %vm472, 0.0
      %474 = vst.msk [vmem:[#allocation2 + $0x10] sm:$0xff] %vm470, 0.0
      %475 = vst.msk [vmem:[#allocation2 + $0x18] sm:$0x3] %vm472, 0.0
      %476 = vst.msk [vmem:[#allocation2 + $0x20] sm:$0xff] %vm470, 0.0
      %477 = vst.msk [vmem:[#allocation2 + $0x28] sm:$0x3] %vm472, 0.0
      %478 = vst.msk [vmem:[#allocation2 + $0x30] sm:$0xff] %vm470, 0.0
      %479 = vst.msk [vmem:[#allocation2 + $0x38] sm:$0x3] %vm472, 0.0
      %480 = vst.msk [vmem:[#allocation2 + $0x40] sm:$0xff] %vm470, 0.0
      %481 = vst.msk [vmem:[#allocation2 + $0x48] sm:$0x3] %vm472, 0.0
      %482 = vst.msk [vmem:[#allocation2 + $0x50] sm:$0xff] %vm470, 0.0
      %483 = vst.msk [vmem:[#allocation2 + $0x58] sm:$0x3] %vm472, 0.0
      %484 = vst.msk [vmem:[#allocation2 + $0x1] sm:$0xff] %vm470, %v459
      %s485 = scalar_lea.vmem [#allocation2], 16
      %486 = vst.msk [vmem:[%s485 + $0x1] sm:$0xff] %vm470, %v446
      %487 = vst.msk [vmem:[%s485 + $0x11] sm:$0xff] %vm470, %v447
      %488 = vst.msk [vmem:[%s485 + $0x21] sm:$0xff] %vm470, %v448
      %489 = vst.msk [vmem:[%s485 + $0x31] sm:$0xff] %vm470, %v449
      %s490 = scalar_lea.vmem [#allocation2], 80
      %491 = vst.msk [vmem:[%s490 + $0x1] sm:$0xff] %vm470, %v469
      %v492 = vld [vmem:[#allocation2] sm:$0xff]
      %v493 = vld [vmem:[#allocation2 + $0x8] sm:$0x3]
      %v494 = vld [vmem:[#allocation2 + $0x10] sm:$0xff]
      %v495 = vld [vmem:[#allocation2 + $0x18] sm:$0x3]
      %v496 = vld [vmem:[#allocation2 + $0x20] sm:$0xff]
      %v497 = vld [vmem:[#allocation2 + $0x28] sm:$0x3]
      %v498 = vld [vmem:[#allocation2 + $0x30] sm:$0xff]
      %v499 = vld [vmem:[#allocation2 + $0x38] sm:$0x3]
      %v500 = vld [vmem:[#allocation2 + $0x40] sm:$0xff]
      %v501 = vld [vmem:[#allocation2 + $0x48] sm:$0x3]
      %v502 = vld [vmem:[#allocation2 + $0x50] sm:$0xff]
      %v503 = vld [vmem:[#allocation2 + $0x58] sm:$0x3]
      %v504 = vld [vmem:[%s3] sm:$0xf]
      %vm513 = vcmask 1046528
      %v514 = vrot.slane %v492, 1
      %v515 = vrot.slane %v493, 1
      %v516 = vsel %vm513, %v514, %v515
      %v517 = vrot.slane %v494, 1
      %v518 = vrot.slane %v495, 1
      %v519 = vsel %vm513, %v517, %v518
      %v520 = vrot.slane %v496, 1
      %v521 = vrot.slane %v497, 1
      %v522 = vsel %vm513, %v520, %v521
      %v523 = vrot.slane %v498, 1
      %v524 = vrot.slane %v499, 1
      %v525 = vsel %vm513, %v523, %v524
      %s526 = scalar_lea.vmem %s3, 4
      %v527 = vld [vmem:[%s526] sm:$0xf]
      %v528 = vsel %vm470, %v516, 0
      %v530 = vsel %vm470, %v519, 0
      %v532 = vsel %vm470, %v522, 0
      %v534 = vsel %vm470, %v525, 0
      %vm536 = vcmask 1043456
      %v538 = vsel %vm536, %v527, 0
      %540 = vmatpush.msra.mxu0 0.0
      %541 = vmatpush.msra.mxu0 0.0
      %542 = vmatpush.msra.mxu0 0.0
      %543 = vmatpush.msra.mxu0 0.0
      %544 = vmatpush.msra.mxu0 0.0
      %545 = vmatpush.msra.mxu0 0.0
      %546 = vmatpush.msra.mxu0 0.0
      %547 = vmatpush.msra.mxu0 0.0
      %548 = vmatpush.msra.mxu0 0.0
      %549 = vmatpush.msra.mxu0 0.0
      %550 = vmatpush.msra.mxu0 0.0
      %551 = vmatpush.msra.mxu0 0.0
      %552 = vmatpush.msra.mxu0 0.0
      %553 = vmatpush.msra.mxu0 0.0
      %554 = vmatpush.msra.mxu0 0.0
      %555 = vmatpush.msra.mxu0 %v538
      %556 = vmatmul.f32.gmra.mxu0 %v528
      %v557 = vpop.f32.mrf.mxu0
      %v558 = vadd.f32 0.0, %v557
      %559 = vmatmul.f32.gmra.mxu0 %v530
      %v560 = vpop.f32.mrf.mxu0
      %v561 = vadd.f32 0.0, %v560
      %562 = vmatmul.f32.gmra.mxu0 %v532
      %v563 = vpop.f32.mrf.mxu0
      %v564 = vadd.f32 0.0, %v563
      %565 = vmatmul.f32.gmra.mxu0 %v534
      %v566 = vpop.f32.mrf.mxu0
      %v567 = vadd.f32 0.0, %v566
      %568 = vdwg.mxu0
      %v569 = vsel %vm470, %v492, 0
      %v571 = vsel %vm470, %v494, 0
      %v573 = vsel %vm470, %v496, 0
      %v575 = vsel %vm470, %v498, 0
      %v578 = vsel %vm536, %v504, 0
      %580 = vmatpush.msra.mxu0 0.0
      %581 = vmatpush.msra.mxu0 0.0
      %582 = vmatpush.msra.mxu0 0.0
      %583 = vmatpush.msra.mxu0 0.0
      %584 = vmatpush.msra.mxu0 0.0
      %585 = vmatpush.msra.mxu0 0.0
      %586 = vmatpush.msra.mxu0 0.0
      %587 = vmatpush.msra.mxu0 0.0
      %588 = vmatpush.msra.mxu0 0.0
      %589 = vmatpush.msra.mxu0 0.0
      %590 = vmatpush.msra.mxu0 0.0
      %591 = vmatpush.msra.mxu0 0.0
      %592 = vmatpush.msra.mxu0 0.0
      %593 = vmatpush.msra.mxu0 0.0
      %594 = vmatpush.msra.mxu0 0.0
      %595 = vmatpush.msra.mxu0 %v578
      %596 = vmatmul.f32.gmra.mxu0 %v569
      %v597 = vpop.f32.mrf.mxu0
      %v598 = vadd.f32 %v558, %v597
      %599 = vmatmul.f32.gmra.mxu0 %v571
      %v600 = vpop.f32.mrf.mxu0
      %v601 = vadd.f32 %v561, %v600
      %602 = vmatmul.f32.gmra.mxu0 %v573
      %v603 = vpop.f32.mrf.mxu0
      %v604 = vadd.f32 %v564, %v603
      %605 = vmatmul.f32.gmra.mxu0 %v575
      %v606 = vpop.f32.mrf.mxu0
      %v607 = vadd.f32 %v567, %v606
      %608 = vdwg.mxu0
      %vm609 = vcmask 1045504
      %v610 = vrot.slane %v492, 2
      %v611 = vrot.slane %v493, 2
      %v612 = vsel %vm609, %v610, %v611
      %v613 = vrot.slane %v494, 2
      %v614 = vrot.slane %v495, 2
      %v615 = vsel %vm609, %v613, %v614
      %v616 = vrot.slane %v496, 2
      %v617 = vrot.slane %v497, 2
      %v618 = vsel %vm609, %v616, %v617
      %v619 = vrot.slane %v498, 2
      %v620 = vrot.slane %v499, 2
      %v621 = vsel %vm609, %v619, %v620
      %s622 = scalar_lea.vmem %s3, 8
      %v623 = vld [vmem:[%s622] sm:$0xf]
      %v624 = vsel %vm470, %v612, 0
      %v626 = vsel %vm470, %v615, 0
      %v628 = vsel %vm470, %v618, 0
      %v630 = vsel %vm470, %v621, 0
      %v633 = vsel %vm536, %v623, 0
      %635 = vmatpush.msra.mxu0 0.0
      %636 = vmatpush.msra.mxu0 0.0
      %637 = vmatpush.msra.mxu0 0.0
      %638 = vmatpush.msra.mxu0 0.0
      %639 = vmatpush.msra.mxu0 0.0
      %640 = vmatpush.msra.mxu0 0.0
      %641 = vmatpush.msra.mxu0 0.0
      %642 = vmatpush.msra.mxu0 0.0
      %643 = vmatpush.msra.mxu0 0.0
      %644 = vmatpush.msra.mxu0 0.0
      %645 = vmatpush.msra.mxu0 0.0
      %646 = vmatpush.msra.mxu0 0.0
      %647 = vmatpush.msra.mxu0 0.0
      %648 = vmatpush.msra.mxu0 0.0
      %649 = vmatpush.msra.mxu0 0.0
      %650 = vmatpush.msra.mxu0 %v633
      %651 = vmatmul.f32.gmra.mxu0 %v624
      %v652 = vpop.f32.mrf.mxu0
      %v653 = vadd.f32 0.0, %v652
      %654 = vmatmul.f32.gmra.mxu0 %v626
      %v655 = vpop.f32.mrf.mxu0
      %v656 = vadd.f32 0.0, %v655
      %657 = vmatmul.f32.gmra.mxu0 %v628
      %v658 = vpop.f32.mrf.mxu0
      %v659 = vadd.f32 0.0, %v658
      %660 = vmatmul.f32.gmra.mxu0 %v630
      %v661 = vpop.f32.mrf.mxu0
      %v662 = vadd.f32 0.0, %v661
      %663 = vdwg.mxu0
      %v664 = vadd.f32 %v598, %v653
      %v665 = vadd.f32 %v601, %v656
      %v666 = vadd.f32 %v604, %v659
      %v667 = vadd.f32 %v607, %v662
      %s668 = scalar_lea.vmem %s3, 12
      %v669 = vld [vmem:[%s668] sm:$0xf]
      %v671 = vsel %vm470, %v500, 0
      %v674 = vsel %vm536, %v669, 0
      %676 = vmatpush.msra.mxu0 0.0
      %677 = vmatpush.msra.mxu0 0.0
      %678 = vmatpush.msra.mxu0 0.0
      %679 = vmatpush.msra.mxu0 0.0
      %680 = vmatpush.msra.mxu0 0.0
      %681 = vmatpush.msra.mxu0 0.0
      %682 = vmatpush.msra.mxu0 0.0
      %683 = vmatpush.msra.mxu0 0.0
      %684 = vmatpush.msra.mxu0 0.0
      %685 = vmatpush.msra.mxu0 0.0
      %686 = vmatpush.msra.mxu0 0.0
      %687 = vmatpush.msra.mxu0 0.0
      %688 = vmatpush.msra.mxu0 0.0
      %689 = vmatpush.msra.mxu0 0.0
      %690 = vmatpush.msra.mxu0 0.0
      %691 = vmatpush.msra.mxu0 %v674
      %692 = vmatmul.f32.gmra.mxu0 %v571
      %v693 = vpop.f32.mrf.mxu0
      %v694 = vadd.f32 0.0, %v693
      %695 = vmatmul.f32.gmra.mxu0 %v573
      %v696 = vpop.f32.mrf.mxu0
      %v697 = vadd.f32 0.0, %v696
      %698 = vmatmul.f32.gmra.mxu0 %v575
      %v699 = vpop.f32.mrf.mxu0
      %v700 = vadd.f32 0.0, %v699
      %701 = vmatmul.f32.gmra.mxu0 %v671
      %v702 = vpop.f32.mrf.mxu0
      %v703 = vadd.f32 0.0, %v702
      %704 = vdwg.mxu0
      %v705 = vadd.f32 %v664, %v694
      %v706 = vadd.f32 %v665, %v697
      %v707 = vadd.f32 %v666, %v700
      %v708 = vadd.f32 %v667, %v703
      %v710 = vrot.slane %v500, 1
      %v711 = vrot.slane %v501, 1
      %v712 = vsel %vm513, %v710, %v711
      %s713 = scalar_lea.vmem %s3, 16
      %v714 = vld [vmem:[%s713] sm:$0xf]
      %v715 = vsel %vm470, %v712, 0
      %v718 = vsel %vm536, %v714, 0
      %720 = vmatpush.msra.mxu0 0.0
      %721 = vmatpush.msra.mxu0 0.0
      %722 = vmatpush.msra.mxu0 0.0
      %723 = vmatpush.msra.mxu0 0.0
      %724 = vmatpush.msra.mxu0 0.0
      %725 = vmatpush.msra.mxu0 0.0
      %726 = vmatpush.msra.mxu0 0.0
      %727 = vmatpush.msra.mxu0 0.0
      %728 = vmatpush.msra.mxu0 0.0
      %729 = vmatpush.msra.mxu0 0.0
      %730 = vmatpush.msra.mxu0 0.0
      %731 = vmatpush.msra.mxu0 0.0
      %732 = vmatpush.msra.mxu0 0.0
      %733 = vmatpush.msra.mxu0 0.0
      %734 = vmatpush.msra.mxu0 0.0
      %735 = vmatpush.msra.mxu0 %v718
      %736 = vmatmul.f32.gmra.mxu0 %v530
      %v737 = vpop.f32.mrf.mxu0
      %v738 = vadd.f32 0.0, %v737
      %739 = vmatmul.f32.gmra.mxu0 %v532
      %v740 = vpop.f32.mrf.mxu0
      %v741 = vadd.f32 0.0, %v740
      %742 = vmatmul.f32.gmra.mxu0 %v534
      %v743 = vpop.f32.mrf.mxu0
      %v744 = vadd.f32 0.0, %v743
      %745 = vmatmul.f32.gmra.mxu0 %v715
      %v746 = vpop.f32.mrf.mxu0
      %v747 = vadd.f32 0.0, %v746
      %748 = vdwg.mxu0
      %v749 = vadd.f32 %v705, %v738
      %v750 = vadd.f32 %v706, %v741
      %v751 = vadd.f32 %v707, %v744
      %v752 = vadd.f32 %v708, %v747
      %v753 = vrot.slane %v500, 2
      %v754 = vrot.slane %v501, 2
      %v755 = vsel %vm609, %v753, %v754
      %s756 = scalar_lea.vmem %s3, 20
      %v757 = vld [vmem:[%s756] sm:$0xf]
      %v758 = vsel %vm470, %v755, 0
      %v761 = vsel %vm536, %v757, 0
      %763 = vmatpush.msra.mxu0 0.0
      %764 = vmatpush.msra.mxu0 0.0
      %765 = vmatpush.msra.mxu0 0.0
      %766 = vmatpush.msra.mxu0 0.0
      %767 = vmatpush.msra.mxu0 0.0
      %768 = vmatpush.msra.mxu0 0.0
      %769 = vmatpush.msra.mxu0 0.0
      %770 = vmatpush.msra.mxu0 0.0
      %771 = vmatpush.msra.mxu0 0.0
      %772 = vmatpush.msra.mxu0 0.0
      %773 = vmatpush.msra.mxu0 0.0
      %774 = vmatpush.msra.mxu0 0.0
      %775 = vmatpush.msra.mxu0 0.0
      %776 = vmatpush.msra.mxu0 0.0
      %777 = vmatpush.msra.mxu0 0.0
      %778 = vmatpush.msra.mxu0 %v761
      %779 = vmatmul.f32.gmra.mxu0 %v626
      %v780 = vpop.f32.mrf.mxu0
      %v781 = vadd.f32 0.0, %v780
      %782 = vmatmul.f32.gmra.mxu0 %v628
      %v783 = vpop.f32.mrf.mxu0
      %v784 = vadd.f32 0.0, %v783
      %785 = vmatmul.f32.gmra.mxu0 %v630
      %v786 = vpop.f32.mrf.mxu0
      %v787 = vadd.f32 0.0, %v786
      %788 = vmatmul.f32.gmra.mxu0 %v758
      %v789 = vpop.f32.mrf.mxu0
      %v790 = vadd.f32 0.0, %v789
      %791 = vdwg.mxu0
      %v792 = vadd.f32 %v749, %v781
      %v793 = vadd.f32 %v750, %v784
      %v794 = vadd.f32 %v751, %v787
      %v795 = vadd.f32 %v752, %v790
      %s796 = scalar_lea.vmem %s3, 24
      %v797 = vld [vmem:[%s796] sm:$0xf]
      %v799 = vsel %vm470, %v502, 0
      %v802 = vsel %vm536, %v797, 0
      %804 = vmatpush.msra.mxu0 0.0
      %805 = vmatpush.msra.mxu0 0.0
      %806 = vmatpush.msra.mxu0 0.0
      %807 = vmatpush.msra.mxu0 0.0
      %808 = vmatpush.msra.mxu0 0.0
      %809 = vmatpush.msra.mxu0 0.0
      %810 = vmatpush.msra.mxu0 0.0
      %811 = vmatpush.msra.mxu0 0.0
      %812 = vmatpush.msra.mxu0 0.0
      %813 = vmatpush.msra.mxu0 0.0
      %814 = vmatpush.msra.mxu0 0.0
      %815 = vmatpush.msra.mxu0 0.0
      %816 = vmatpush.msra.mxu0 0.0
      %817 = vmatpush.msra.mxu0 0.0
      %818 = vmatpush.msra.mxu0 0.0
      %819 = vmatpush.msra.mxu0 %v802
      %820 = vmatmul.f32.gmra.mxu0 %v573
      %v821 = vpop.f32.mrf.mxu0
      %v822 = vadd.f32 0.0, %v821
      %823 = vmatmul.f32.gmra.mxu0 %v575
      %v824 = vpop.f32.mrf.mxu0
      %v825 = vadd.f32 0.0, %v824
      %826 = vmatmul.f32.gmra.mxu0 %v671
      %v827 = vpop.f32.mrf.mxu0
      %v828 = vadd.f32 0.0, %v827
      %829 = vmatmul.f32.gmra.mxu0 %v799
      %v830 = vpop.f32.mrf.mxu0
      %v831 = vadd.f32 0.0, %v830
      %832 = vdwg.mxu0
      %v833 = vadd.f32 %v792, %v822
      %v834 = vadd.f32 %v793, %v825
      %v835 = vadd.f32 %v794, %v828
      %v836 = vadd.f32 %v795, %v831
      %v838 = vrot.slane %v502, 1
      %v839 = vrot.slane %v503, 1
      %v840 = vsel %vm513, %v838, %v839
      %s841 = scalar_lea.vmem %s3, 28
      %v842 = vld [vmem:[%s841] sm:$0xf]
      %v843 = vsel %vm470, %v840, 0
      %v846 = vsel %vm536, %v842, 0
      %848 = vmatpush.msra.mxu0 0.0
      %849 = vmatpush.msra.mxu0 0.0
      %850 = vmatpush.msra.mxu0 0.0
      %851 = vmatpush.msra.mxu0 0.0
      %852 = vmatpush.msra.mxu0 0.0
      %853 = vmatpush.msra.mxu0 0.0
      %854 = vmatpush.msra.mxu0 0.0
      %855 = vmatpush.msra.mxu0 0.0
      %856 = vmatpush.msra.mxu0 0.0
      %857 = vmatpush.msra.mxu0 0.0
      %858 = vmatpush.msra.mxu0 0.0
      %859 = vmatpush.msra.mxu0 0.0
      %860 = vmatpush.msra.mxu0 0.0
      %861 = vmatpush.msra.mxu0 0.0
      %862 = vmatpush.msra.mxu0 0.0
      %863 = vmatpush.msra.mxu0 %v846
      %864 = vmatmul.f32.gmra.mxu0 %v532
      %v865 = vpop.f32.mrf.mxu0
      %v866 = vadd.f32 0.0, %v865
      %867 = vmatmul.f32.gmra.mxu0 %v534
      %v868 = vpop.f32.mrf.mxu0
      %v869 = vadd.f32 0.0, %v868
      %870 = vmatmul.f32.gmra.mxu0 %v715
      %v871 = vpop.f32.mrf.mxu0
      %v872 = vadd.f32 0.0, %v871
      %873 = vmatmul.f32.gmra.mxu0 %v843
      %v874 = vpop.f32.mrf.mxu0
      %v875 = vadd.f32 0.0, %v874
      %876 = vdwg.mxu0
      %v877 = vadd.f32 %v833, %v866
      %v878 = vadd.f32 %v834, %v869
      %v879 = vadd.f32 %v835, %v872
      %v880 = vadd.f32 %v836, %v875
      %v881 = vrot.slane %v502, 2
      %v882 = vrot.slane %v503, 2
      %v883 = vsel %vm609, %v881, %v882
      %s884 = scalar_lea.vmem %s3, 32
      %v885 = vld [vmem:[%s884] sm:$0xf]
      %v886 = vsel %vm470, %v883, 0
      %v889 = vsel %vm536, %v885, 0
      %891 = vmatpush.msra.mxu0 0.0
      %892 = vmatpush.msra.mxu0 0.0
      %893 = vmatpush.msra.mxu0 0.0
      %894 = vmatpush.msra.mxu0 0.0
      %895 = vmatpush.msra.mxu0 0.0
      %896 = vmatpush.msra.mxu0 0.0
      %897 = vmatpush.msra.mxu0 0.0
      %898 = vmatpush.msra.mxu0 0.0
      %899 = vmatpush.msra.mxu0 0.0
      %900 = vmatpush.msra.mxu0 0.0
      %901 = vmatpush.msra.mxu0 0.0
      %902 = vmatpush.msra.mxu0 0.0
      %903 = vmatpush.msra.mxu0 0.0
      %904 = vmatpush.msra.mxu0 0.0
      %905 = vmatpush.msra.mxu0 0.0
      %906 = vmatpush.msra.mxu0 %v889
      %907 = vmatmul.f32.gmra.mxu0 %v628
      %v908 = vpop.f32.mrf.mxu0
      %v909 = vadd.f32 0.0, %v908
      %910 = vmatmul.f32.gmra.mxu0 %v630
      %v911 = vpop.f32.mrf.mxu0
      %v912 = vadd.f32 0.0, %v911
      %913 = vmatmul.f32.gmra.mxu0 %v758
      %v914 = vpop.f32.mrf.mxu0
      %v915 = vadd.f32 0.0, %v914
      %916 = vmatmul.f32.gmra.mxu0 %v886
      %v917 = vpop.f32.mrf.mxu0
      %v918 = vadd.f32 0.0, %v917
      %919 = vdwg.mxu0
      %v920 = vadd.f32 %v877, %v909
      %v921 = vadd.f32 %v878, %v912
      %v922 = vadd.f32 %v879, %v915
      %v923 = vadd.f32 %v880, %v918
      %vm924 = vcmask 64512
      %925 = vst.msk [vmem:[%s402] sm:$0xff] %vm924, %v920
      %926 = vst.msk [vmem:[%s402 + $0x8] sm:$0xff] %vm924, %v921
      %927 = vst.msk [vmem:[%s402 + $0x10] sm:$0xff] %vm924, %v922
      %928 = vst.msk [vmem:[%s402 + $0x18] sm:$0xff] %vm924, %v923
      %v929 = vsel %vm924, %v920, 0.0
      %v930 = vsel %vm924, %v921, 0.0
      %v931 = vadd.f32 %v929, %v930
      %v932 = vsel %vm924, %v922, 0.0
      %v933 = vadd.f32 %v931, %v932
      %v934 = vsel %vm924, %v923, 0.0
      %v935 = vadd.f32 %v933, %v934
      %v936 = vrot.slane %v935, 4
      %v937 = vadd.f32 %v935, %v936
      %v938 = vrot.slane %v937, 2
      %v939 = vadd.f32 %v937, %v938
      %v940 = vrot.slane %v939, 1
      %v941 = vadd.f32 %v939, %v940
      %vm942 = vcmask 57344
      %943 = vst.msk [vmem:[%s411] sm:$0x1] %vm942, %v941
      %v944 = vmul.f32 %v920, %v920
      %v945 = vmul.f32 %v921, %v921
      %v946 = vmul.f32 %v922, %v922
      %v947 = vmul.f32 %v923, %v923
      %v948 = vsel %vm924, %v944, 0.0
      %v949 = vsel %vm924, %v945, 0.0
      %v950 = vadd.f32 %v948, %v949
      %v951 = vsel %vm924, %v946, 0.0
      %v952 = vadd.f32 %v950, %v951
      %v953 = vsel %vm924, %v947, 0.0
      %v954 = vadd.f32 %v952, %v953
      %v955 = vrot.slane %v954, 4
      %v956 = vadd.f32 %v954, %v955
      %v957 = vrot.slane %v956, 2
      %v958 = vadd.f32 %v956, %v957
      %v959 = vrot.slane %v958, 1
      %v960 = vadd.f32 %v958, %v959
      %961 = vst.msk [vmem:[%s411 + $0x1] sm:$0x1] %vm942, %v960
      %s962 = smul.u32 4, %s22
      %p963 = scmp.lt.s32.totalorder %s21, 1
      %s964 = scalar_select %p963, %s21, 1
      %p965 = scmp.lt.s32.totalorder %s962, 7
      %s966 = scalar_select %p965, %s962, 7
      %s967 = smul.addr %s964, 8
      %s968 = sadd.s32 %s966, %s967
      %s969 = smul.addr %s968, 8
      %s970 = scalar_lea.vmem %s4, %s969
      %p971 = scmp.lt.s32.totalorder %s21, 1
      %s972 = scalar_select %p971, %s21, 1
      %p973 = scmp.lt.s32.totalorder %s22, 1
      %s974 = scalar_select %p973, %s22, 1
      %s975 = smul.addr %s972, 2
      %s976 = sadd.s32 %s974, %s975
      %s977 = smul.addr %s976, 2
      %s978 = scalar_lea.vmem %s5, %s977
      // Predicated region
      $region37: #{down_conv2d_forward.3} parent=35 // pred_check
        %p979 = pneg %p170
      $region38: #{down_conv2d_forward.3} parent=35 // pred_check_branch
        %981 = sbr.rel (%p979) target = $region40
      $region39: #{down_conv2d_forward.3} parent=35 // pred_region
        %s982 = smul.u32 4, %s22
      $region40: #{down_conv2d_forward.3} parent=35 // pred_fallthru
        _
      // Predicated region
      $region41: #{down_conv2d_forward.3} parent=35 // pred_check
        %p983 = pneg %p198
      $region42: #{down_conv2d_forward.3} parent=35 // pred_check_branch
        %985 = sbr.rel (%p983) target = $region44
      $region43: #{down_conv2d_forward.3} parent=35 // pred_region
        _
      $region44: #{down_conv2d_forward.3} parent=35 // pred_fallthru
        _
    $region36: #{down_conv2d_forward.3} parent=5 // pred_fallthru
      _
    %p986 = scmp.le.s32.totalorder 2, %s12
    // Predicated region
    $region45: #{down_conv2d_forward.3} parent=5 // pred_check
      %p987 = pneg %p986
    $region46: #{down_conv2d_forward.3} parent=5 // pred_check_branch
      %989 = sbr.rel (%p987) target = $region48
    $region47: #{down_conv2d_forward.3} parent=5 // pred_region
      %s990 = ssub.s32 %s12, 2
      // Predicated region
      $region49: #{down_conv2d_forward.3} parent=47 // pred_check
        %p991 = pneg %p176
      $region50: #{down_conv2d_forward.3} parent=47 // pred_check_branch
        %993 = sbr.rel (%p991) target = $region52
      $region51: #{down_conv2d_forward.3} parent=47 // pred_region
        %s994 = smul.u32 4, %s24
        %p995 = scmp.lt.s32.totalorder %s23, 1
        %s996 = scalar_select %p995, %s23, 1
        %p997 = scmp.lt.s32.totalorder %s994, 7
        %s998 = scalar_select %p997, %s994, 7
        %s999 = smul.addr %s996, 8
        %s1000 = sadd.s32 %s998, %s999
        %s1001 = smul.addr %s1000, 8
        %s1002 = scalar_lea.vmem %s4, %s1001
      $region52: #{down_conv2d_forward.3} parent=47 // pred_fallthru
        _
      // Predicated region
      $region53: #{down_conv2d_forward.3} parent=47 // pred_check
        %p1003 = pneg %p204
      $region54: #{down_conv2d_forward.3} parent=47 // pred_check_branch
        %1005 = sbr.rel (%p1003) target = $region56
      $region55: #{down_conv2d_forward.3} parent=47 // pred_region
        %p1006 = scmp.lt.s32.totalorder %s23, 1
        %s1007 = scalar_select %p1006, %s23, 1
        %p1008 = scmp.lt.s32.totalorder %s24, 1
        %s1009 = scalar_select %p1008, %s24, 1
        %s1010 = smul.addr %s1007, 2
        %s1011 = sadd.s32 %s1009, %s1010
        %s1012 = smul.addr %s1011, 2
        %s1013 = scalar_lea.vmem %s5, %s1012
      $region56: #{down_conv2d_forward.3} parent=47 // pred_fallthru
        _
    $region48: #{down_conv2d_forward.3} parent=5 // pred_fallthru
      _
  $region6: #{down_conv2d_forward.3} parent=0 // loop_footer
    %s16 = sadd.s32 1, %s12
  $region7: #{down_conv2d_forward.3} parent=0 // loop_footer_branch
    %11 = sbr.rel target = $region3
  $region8: #{down_conv2d_forward.3} parent=0 // loop_exit
    _

</llo_original>
